<compile_context>
chip_gen: v5e
topology: v5e:2x2
jax: 0.10.0
libtpu: 0.0.40
codegen_flags: <defaults>
</compile_context>

<pallas_src>
import jax
import jax.numpy as jnp
from jax.experimental import pallas as pl
from jax.experimental.pallas import tpu as pltpu

HIDDEN = 32        # hidden_size
OUTPUT = 48        # output_size (vocab)
MAX_LENGTH = 16    # attention window
NUM_LAYERS = 4     # nn.GRU(num_layers=4)
GATES = 3 * HIDDEN


def _attn_decoder_kernel(
    tok_ref,                                   # SMEM (T,) int32 -- scalar prefetch
    emb_tbl_ref, hid0_ref, enc_ref,
    w_emb_ref, b_attn_ref,
    w_hf_ref, w_comb_a_ref, b_comb_ref,
    w_ih_ref, b_ih_ref, b_hh_ref,
    w_out_ref, b_out_ref,
    logp_ref, attnw_ref, newhid_ref,
    hid_scratch,
):
    H, L, G, A = HIDDEN, NUM_LAYERS, GATES, MAX_LENGTH
    t = pl.program_id(0)

    # hidden state carry lives in VMEM scratch as a lane-dense (1, L*H) row
    @pl.when(t == 0)
    def _():
        hid_scratch[...] = hid0_ref[...]

    h_flat = hid_scratch[...]                                          # (1, L*H)

    # ---- in-kernel embedding gather (one-hot matmul on the VMEM-resident table) ----
    # TODO(synk): nn.Dropout(p=0.1) is treated as inference-mode identity.
    tok = tok_ref[t]
    onehot = (jax.lax.broadcasted_iota(jnp.int32, (1, OUTPUT), 1) == tok).astype(jnp.float32)
    emb = jnp.dot(onehot, emb_tbl_ref[...], preferred_element_type=jnp.float32)   # (1, H)

    # ---- fused hidden projection: attn-logit contribution of h[0] (cols 0:A)
    #      + block-diagonal GRU g_h for all 4 layers (cols A:A+L*G), hoisted here ----
    hproj = jnp.dot(h_flat, w_hf_ref[...], preferred_element_type=jnp.float32)    # (1, A + L*G)
    attn_h = hproj[:, :A]
    gh_all = hproj[:, A:] + b_hh_ref[...]                                          # (1, L*G)

    # ---- fused embedded projection: attn half (cols 0:A) + attn_combine half (cols A:) ----
    eproj = jnp.dot(emb, w_emb_ref[...], preferred_element_type=jnp.float32)       # (1, A + H)
    attn_e = eproj[:, :A]
    comb_e = eproj[:, A:]

    # attention softmax over MAX_LENGTH
    attn_logits = attn_e + attn_h + b_attn_ref[...]
    m = jnp.max(attn_logits, axis=1, keepdims=True)
    e = jnp.exp(attn_logits - m)
    attn_w = e / jnp.sum(e, axis=1, keepdims=True)
    attnw_ref[...] = attn_w

    # attn_applied = attn_weights @ encoder_outputs
    attn_applied = jnp.dot(attn_w, enc_ref[...], preferred_element_type=jnp.float32)  # (1, H)

    # attn_combine + ReLU
    x = comb_e + jnp.dot(attn_applied, w_comb_a_ref[...],
                         preferred_element_type=jnp.float32) + b_comb_ref[...]
    x = jnp.maximum(x, 0.0)

    # 4-layer GRU (seq_len=1, batch=1).  g_h already computed above; only the g_i
    # matmuls remain on the serial layer-to-layer dependency chain.
    new_h = []
    for l in range(L):
        h_prev = h_flat[:, l * H:(l + 1) * H]
        gi = jnp.dot(x, w_ih_ref[l], preferred_element_type=jnp.float32) + b_ih_ref[pl.ds(l, 1), :]
        gh = gh_all[:, l * G:(l + 1) * G]
        r = jax.nn.sigmoid(gi[:, 0:H] + gh[:, 0:H])
        z = jax.nn.sigmoid(gi[:, H:2 * H] + gh[:, H:2 * H])
        n = jnp.tanh(gi[:, 2 * H:] + r * gh[:, 2 * H:])
        h_l = (1.0 - z) * n + z * h_prev
        new_h.append(h_l)
        x = h_l

    hid_scratch[...] = jnp.concatenate(new_h, axis=1)                  # (1, L*H), lane-dense

    # output head + log_softmax
    logits = jnp.dot(x, w_out_ref[...], preferred_element_type=jnp.float32) + b_out_ref[...]
    m2 = jnp.max(logits, axis=1, keepdims=True)
    lse = jnp.log(jnp.sum(jnp.exp(logits - m2), axis=1, keepdims=True)) + m2
    logp_ref[...] = logits - lse

    # emit the final hidden once, as a single unmasked 128-lane store
    @pl.when(t == pl.num_programs(0) - 1)
    def _():
        newhid_ref[...] = hid_scratch[...]


def init_params(key):
    ks = jax.random.split(key, 16)
    s = 0.1
    return {
        "embedding": s * jax.random.normal(ks[0], (OUTPUT, HIDDEN), jnp.float32),
        "w_attn": s * jax.random.normal(ks[1], (2 * HIDDEN, MAX_LENGTH), jnp.float32),
        "b_attn": s * jax.random.normal(ks[2], (1, MAX_LENGTH), jnp.float32),
        "w_comb": s * jax.random.normal(ks[3], (2 * HIDDEN, HIDDEN), jnp.float32),
        "b_comb": s * jax.random.normal(ks[4], (1, HIDDEN), jnp.float32),
        "w_ih": s * jax.random.normal(ks[5], (NUM_LAYERS, HIDDEN, GATES), jnp.float32),
        "w_hh": s * jax.random.normal(ks[6], (NUM_LAYERS, HIDDEN, GATES), jnp.float32),
        "b_ih": s * jax.random.normal(ks[7], (NUM_LAYERS, 1, GATES), jnp.float32),
        "b_hh": s * jax.random.normal(ks[8], (NUM_LAYERS, 1, GATES), jnp.float32),
        "w_out": s * jax.random.normal(ks[9], (HIDDEN, OUTPUT), jnp.float32),
        "b_out": s * jax.random.normal(ks[10], (1, OUTPUT), jnp.float32),
    }


def pack_params(params):
    """Host-side weight packing (do once per set of weights, not per decode step)."""
    H, L, G, A = HIDDEN, NUM_LAYERS, GATES, MAX_LENGTH
    w_attn, w_comb = params["w_attn"], params["w_comb"]

    # embedded-input fusion: [ attn(emb half) | attn_combine(emb half) ]  -> (H, A+H)
    w_emb_fused = jnp.concatenate([w_attn[:H], w_comb[:H]], axis=1)

    # hidden fusion: cols 0:A use only rows 0:H (= attn hidden half); cols A: are the
    # block-diagonal stack of the four (H, 3H) GRU w_hh matrices  -> (L*H, A + L*G)
    attn_h_block = jnp.concatenate(
        [w_attn[H:], jnp.zeros(((L - 1) * H, A), jnp.float32)], axis=0)
    whh_bd = jnp.zeros((L * H, L * G), jnp.float32)
    for l in range(L):
        whh_bd = whh_bd.at[l * H:(l + 1) * H, l * G:(l + 1) * G].set(params["w_hh"][l])
    w_h_fused = jnp.concatenate([attn_h_block, whh_bd], axis=1)

    return {
        "emb_table": params["embedding"],
        "w_emb_fused": w_emb_fused,
        "b_attn": params["b_attn"],
        "w_h_fused": w_h_fused,
        "w_comb_attn": w_comb[H:],
        "b_comb": params["b_comb"],
        "w_ih": params["w_ih"],
        "b_ih": params["b_ih"].reshape(L, G),
        "b_hh": params["b_hh"].reshape(1, L * G),
        "w_out": params["w_out"],
        "b_out": params["b_out"],
    }


def attn_decoder_decode(params, tokens, hidden, encoder_outputs):
    """Decode T tokens with one pallas_call. T=1 reproduces the module's single forward."""
    H, L, G, A = HIDDEN, NUM_LAYERS, GATES, MAX_LENGTH
    packed = pack_params(params)
    T = int(tokens.shape[0])
    tokens = tokens.astype(jnp.int32)
    hid0 = hidden.astype(jnp.float32).reshape(1, L * H)

    resident2 = lambda shape: pl.BlockSpec(shape, lambda t, tok: (0, 0))
    resident3 = lambda shape: pl.BlockSpec(shape, lambda t, tok: (0, 0, 0))

    grid_spec = pltpu.PrefetchScalarGridSpec(
        num_scalar_prefetch=1,
        grid=(T,),
        in_specs=[
            resident2((OUTPUT, H)),            # embedding table
            resident2((1, L * H)),             # initial hidden (flattened)
            resident2((A, H)),                 # encoder outputs
            resident2((H, A + H)),             # fused emb projection
            resident2((1, A)),                 # b_attn
            resident2((L * H, A + L * G)),     # fused hidden projection (attn + blockdiag w_hh)
            resident2((H, H)),                 # attn_combine, attn_applied half
            resident2((1, H)),                 # b_comb
            resident3((L, H, G)),              # w_ih (per layer)
            resident2((L, G)),                 # b_ih
            resident2((1, L * G)),             # b_hh (flattened)
            resident2((H, OUTPUT)),            # w_out
            resident2((1, OUTPUT)),            # b_out
        ],
        out_specs=[
            pl.BlockSpec((None, 1, OUTPUT), lambda t, tok: (t, 0, 0)),   # log-probs, step t
            pl.BlockSpec((None, 1, A), lambda t, tok: (t, 0, 0)),        # attn weights, step t
            pl.BlockSpec((1, L * H), lambda t, tok: (0, 0)),             # final hidden (resident)
        ],
        scratch_shapes=[pltpu.VMEM((1, L * H), jnp.float32)],            # hidden-state carry
    )

    operands = (
        tokens, packed["emb_table"], hid0, encoder_outputs.astype(jnp.float32),
        packed["w_emb_fused"], packed["b_attn"], packed["w_h_fused"],
        packed["w_comb_attn"], packed["b_comb"], packed["w_ih"], packed["b_ih"],
        packed["b_hh"], packed["w_out"], packed["b_out"],
    )

    flops_step = 2 * (OUTPUT * H + (L * H) * (A + L * G) + H * (A + H)
                      + A * H + H * H + L * H * G + H * OUTPUT)
    bytes_acc = sum(int(a.size) * a.dtype.itemsize for a in operands) \
        + T * (OUTPUT + A) * 4 + L * H * 4

    logp, attnw, newhid = pl.pallas_call(
        _attn_decoder_kernel,
        out_shape=(
            jax.ShapeDtypeStruct((T, 1, OUTPUT), jnp.float32),
            jax.ShapeDtypeStruct((T, 1, A), jnp.float32),
            jax.ShapeDtypeStruct((1, L * H), jnp.float32),
        ),
        grid_spec=grid_spec,
        compiler_params=pltpu.CompilerParams(dimension_semantics=("arbitrary",)),
        cost_estimate=pl.CostEstimate(flops=T * flops_step,
                                      transcendentals=T * 450,
                                      bytes_accessed=bytes_acc),
    )(*operands)

    return (logp.reshape(T, OUTPUT),
            newhid.reshape(L, 1, H),
            attnw.reshape(T, A))


def reference_decode(params, tokens, hidden, encoder_outputs):
    """Pure-JAX mirror of the PyTorch forward (eval mode), applied T times sequentially."""
    H = HIDDEN
    h = hidden.reshape(NUM_LAYERS, H)
    logps, attns = [], []
    for t in range(tokens.shape[0]):
        emb = jnp.take(params["embedding"], tokens[t], axis=0).reshape(1, H)
        cat1 = jnp.concatenate([emb, h[0:1]], axis=1)
        attn_w = jax.nn.softmax(cat1 @ params["w_attn"] + params["b_attn"], axis=1)
        attn_applied = attn_w @ encoder_outputs
        cat2 = jnp.concatenate([emb, attn_applied], axis=1)
        x = jax.nn.relu(cat2 @ params["w_comb"] + params["b_comb"])
        new_h = []
        for l in range(NUM_LAYERS):
            hp = h[l:l + 1]
            gi = x @ params["w_ih"][l] + params["b_ih"][l]
            gh = hp @ params["w_hh"][l] + params["b_hh"][l]
            r = jax.nn.sigmoid(gi[:, :H] + gh[:, :H])
            z = jax.nn.sigmoid(gi[:, H:2 * H] + gh[:, H:2 * H])
            n = jnp.tanh(gi[:, 2 * H:] + r * gh[:, 2 * H:])
            hn = (1.0 - z) * n + z * hp
            new_h.append(hn)
            x = hn
        h = jnp.concatenate(new_h, axis=0)
        logits = x @ params["w_out"] + params["b_out"]
        logps.append(jax.nn.log_softmax(logits, axis=1))
        attns.append(attn_w)
    return (jnp.concatenate(logps, axis=0),
            h.reshape(NUM_LAYERS, 1, H),
            jnp.concatenate(attns, axis=0))


if __name__ == "__main__":
    key = jax.random.PRNGKey(0)
    pkey, hkey, ekey, tkey = jax.random.split(key, 4)
    params = init_params(pkey)

    hidden = 0.1 * jax.random.normal(hkey, (NUM_LAYERS, 1, HIDDEN), jnp.float32)
    encoder_outputs = 0.1 * jax.random.normal(ekey, (MAX_LENGTH, HIDDEN), jnp.float32)

    # Multi-token decode: one pallas_call for the whole sequence.
    T = 6
    tokens = jax.random.randint(tkey, (T,), 0, OUTPUT, dtype=jnp.int32)
    logp, new_hidden, attn_w = attn_decoder_decode(params, tokens, hidden, encoder_outputs)
    jax.block_until_ready((logp, new_hidden, attn_w))

    r_logp, r_hid, r_aw = reference_decode(params, tokens, hidden, encoder_outputs)
    assert logp.shape == (T, OUTPUT)
    assert new_hidden.shape == (NUM_LAYERS, 1, HIDDEN)
    assert attn_w.shape == (T, MAX_LENGTH)
    assert jnp.allclose(logp, r_logp, atol=1e-4)
    assert jnp.allclose(new_hidden, r_hid, atol=1e-4)
    assert jnp.allclose(attn_w, r_aw, atol=1e-4)

    # Single-step (T=1): identical semantics to the original module forward.
    tok1 = jnp.array([5], dtype=jnp.int32)
    logp1, hid1, aw1 = attn_decoder_decode(params, tok1, hidden, encoder_outputs)
    jax.block_until_ready((logp1, hid1, aw1))
    r_logp1, r_hid1, r_aw1 = reference_decode(params, tok1, hidden, encoder_outputs)
    assert jnp.allclose(logp1, r_logp1, atol=1e-4)
    assert jnp.allclose(hid1, r_hid1, atol=1e-4)
    assert jnp.allclose(aw1, r_aw1, atol=1e-4)

    print("KERNEL_OK")
</pallas_src>

<mosaic_0001>
module attributes {stable_mosaic.version = 11 : i64} {
  func.func @_attn_decoder_kernel(%arg0: i32, %arg1: memref<6xi32, #tpu.memory_space<smem>>, %arg2: memref<48x32xf32, #tpu.memory_space<vmem>>, %arg3: memref<1x128xf32, #tpu.memory_space<vmem>>, %arg4: memref<16x32xf32, #tpu.memory_space<vmem>>, %arg5: memref<32x48xf32, #tpu.memory_space<vmem>>, %arg6: memref<1x16xf32, #tpu.memory_space<vmem>>, %arg7: memref<128x400xf32, #tpu.memory_space<vmem>>, %arg8: memref<32x32xf32, #tpu.memory_space<vmem>>, %arg9: memref<1x32xf32, #tpu.memory_space<vmem>>, %arg10: memref<4x32x96xf32, #tpu.memory_space<vmem>>, %arg11: memref<4x96xf32, #tpu.memory_space<vmem>>, %arg12: memref<1x384xf32, #tpu.memory_space<vmem>>, %arg13: memref<32x48xf32, #tpu.memory_space<vmem>>, %arg14: memref<1x48xf32, #tpu.memory_space<vmem>>, %arg15: memref<1x1x48xf32, #tpu.memory_space<vmem>>, %arg16: memref<1x1x16xf32, #tpu.memory_space<vmem>>, %arg17: memref<1x128xf32, #tpu.memory_space<vmem>>, %arg18: memref<1x128xf32, #tpu.memory_space<vmem>>) attributes {dimension_semantics = [#tpu.dimension_semantics<arbitrary>], iteration_bounds = array<i64: 6>, scalar_prefetch = 1 : i64, scratch_operands = 1 : i64, tpu.core_type = #tpu.core_type<tc>, window_params = [{pipeline_mode = #tpu.pipeline_mode<synchronous>, transform_indices = @transform_0, window_bounds = array<i64: 48, 32>}, {pipeline_mode = #tpu.pipeline_mode<synchronous>, transform_indices = @transform_1, window_bounds = array<i64: 1, 128>}, {pipeline_mode = #tpu.pipeline_mode<synchronous>, transform_indices = @transform_2, window_bounds = array<i64: 16, 32>}, {pipeline_mode = #tpu.pipeline_mode<synchronous>, transform_indices = @transform_3, window_bounds = array<i64: 32, 48>}, {pipeline_mode = #tpu.pipeline_mode<synchronous>, transform_indices = @transform_4, window_bounds = array<i64: 1, 16>}, {pipeline_mode = #tpu.pipeline_mode<synchronous>, transform_indices = @transform_5, window_bounds = array<i64: 128, 400>}, {pipeline_mode = #tpu.pipeline_mode<synchronous>, transform_indices = @transform_6, window_bounds = array<i64: 32, 32>}, {pipeline_mode = #tpu.pipeline_mode<synchronous>, transform_indices = @transform_7, window_bounds = array<i64: 1, 32>}, {pipeline_mode = #tpu.pipeline_mode<synchronous>, transform_indices = @transform_8, window_bounds = array<i64: 4, 32, 96>}, {pipeline_mode = #tpu.pipeline_mode<synchronous>, transform_indices = @transform_9, window_bounds = array<i64: 4, 96>}, {pipeline_mode = #tpu.pipeline_mode<synchronous>, transform_indices = @transform_10, window_bounds = array<i64: 1, 384>}, {pipeline_mode = #tpu.pipeline_mode<synchronous>, transform_indices = @transform_11, window_bounds = array<i64: 32, 48>}, {pipeline_mode = #tpu.pipeline_mode<synchronous>, transform_indices = @transform_12, window_bounds = array<i64: 1, 48>}, {transform_indices = @transform_13, window_bounds = array<i64: 1, 1, 48>}, {transform_indices = @transform_14, window_bounds = array<i64: 1, 1, 16>}, {pipeline_mode = #tpu.pipeline_mode<synchronous>, transform_indices = @transform_15, window_bounds = array<i64: 1, 128>}]} {
    %c0_i32 = arith.constant 0 : i32
    %0 = arith.cmpi eq, %arg0, %c0_i32 : i32
    %1 = arith.extui %0 : i1 to i32
    %c0_i32_0 = arith.constant 0 : i32
    %2 = arith.cmpi ne, %1, %c0_i32_0 : i32
    scf.if %2 {
      %c0_74 = arith.constant 0 : index
      %c0_75 = arith.constant 0 : index
      %202 = vector.load %arg3[%c0_74, %c0_75] : memref<1x128xf32, #tpu.memory_space<vmem>>, vector<1x128xf32>
      %c0_76 = arith.constant 0 : index
      %c0_77 = arith.constant 0 : index
      %203 = vector.load %arg18[%c0_76, %c0_77] : memref<1x128xf32, #tpu.memory_space<vmem>>, vector<1x128xf32>
      tpu.vector_store %arg18[%c0_76, %c0_77], %202 {strides = array<i32>} : memref<1x128xf32, #tpu.memory_space<vmem>>, vector<1x128xf32>,
    } else {
    }
    %c0 = arith.constant 0 : index
    %c0_1 = arith.constant 0 : index
    %3 = vector.load %arg18[%c0, %c0_1] : memref<1x128xf32, #tpu.memory_space<vmem>>, vector<1x128xf32>
    %4 = arith.index_cast %arg0 : i32 to index
    %5 = memref.load %arg1[%4] : memref<6xi32, #tpu.memory_space<smem>>
    %6 = tpu.iota {dimensions = array<i32: 1>} : vector<1x48xi32>
    %7 = vector.broadcast %5 : i32 to vector<1x48xi32>
    %8 = arith.cmpi eq, %6, %7 : vector<1x48xi32>
    %9 = arith.extui %8 : vector<1x48xi1> to vector<1x48xi32>
    %10 = arith.sitofp %9 : vector<1x48xi32> to vector<1x48xf32>
    %c0_2 = arith.constant 0 : index
    %c0_3 = arith.constant 0 : index
    %11 = vector.load %arg2[%c0_2, %c0_3] : memref<48x32xf32, #tpu.memory_space<vmem>>, vector<48x32xf32>
    %cst = arith.constant dense<0.000000e+00> : vector<1x32xf32>
    %12 = tpu.matmul %10, %11, %cst {dimension_numbers = #tpu.dot_dimension_numbers<[1], [0], [0], [1], [0, 0, 1, 1], [], []>} : vector<1x48xf32>, vector<48x32xf32>, vector<1x32xf32> -> vector<1x32xf32>
    %c0_4 = arith.constant 0 : index
    %c0_5 = arith.constant 0 : index
    %13 = vector.load %arg7[%c0_4, %c0_5] : memref<128x400xf32, #tpu.memory_space<vmem>>, vector<128x400xf32>
    %cst_6 = arith.constant dense<0.000000e+00> : vector<1x400xf32>
    %14 = tpu.matmul %3, %13, %cst_6 {dimension_numbers = #tpu.dot_dimension_numbers<[1], [0], [0], [1], [0, 0, 1, 1], [], []>} : vector<1x128xf32>, vector<128x400xf32>, vector<1x400xf32> -> vector<1x400xf32>
    %15 = vector.extract_strided_slice %14 {offsets = [0, 0], sizes = [1, 16], strides = [1, 1]} : vector<1x400xf32> to vector<1x16xf32>
    %16 = vector.extract_strided_slice %14 {offsets = [0, 16], sizes = [1, 384], strides = [1, 1]} : vector<1x400xf32> to vector<1x384xf32>
    %c0_7 = arith.constant 0 : index
    %c0_8 = arith.constant 0 : index
    %17 = vector.load %arg12[%c0_7, %c0_8] : memref<1x384xf32, #tpu.memory_space<vmem>>, vector<1x384xf32>
    %18 = arith.addf %16, %17 : vector<1x384xf32>
    %c0_9 = arith.constant 0 : index
    %c0_10 = arith.constant 0 : index
    %19 = vector.load %arg5[%c0_9, %c0_10] : memref<32x48xf32, #tpu.memory_space<vmem>>, vector<32x48xf32>
    %cst_11 = arith.constant dense<0.000000e+00> : vector<1x48xf32>
    %20 = tpu.matmul %12, %19, %cst_11 {dimension_numbers = #tpu.dot_dimension_numbers<[1], [0], [0], [1], [0, 0, 1, 1], [], []>} : vector<1x32xf32>, vector<32x48xf32>, vector<1x48xf32> -> vector<1x48xf32>
    %21 = vector.extract_strided_slice %20 {offsets = [0, 0], sizes = [1, 16], strides = [1, 1]} : vector<1x48xf32> to vector<1x16xf32>
    %22 = vector.extract_strided_slice %20 {offsets = [0, 16], sizes = [1, 32], strides = [1, 1]} : vector<1x48xf32> to vector<1x32xf32>
    %23 = arith.addf %21, %15 : vector<1x16xf32>
    %c0_12 = arith.constant 0 : index
    %c0_13 = arith.constant 0 : index
    %24 = vector.load %arg6[%c0_12, %c0_13] : memref<1x16xf32, #tpu.memory_space<vmem>>, vector<1x16xf32>
    %25 = arith.addf %23, %24 : vector<1x16xf32>
    %cst_14 = arith.constant dense<0xFF800000> : vector<1xf32>
    %26 = vector.multi_reduction <maximumf>, %25, %cst_14 [1] : vector<1x16xf32> to vector<1xf32>
    %27 = vector.shape_cast %26 : vector<1xf32> to vector<1x1xf32>
    %28 = vector.broadcast %27 : vector<1x1xf32> to vector<1x16xf32>
    %29 = arith.subf %25, %28 : vector<1x16xf32>
    %30 = math.exp %29 : vector<1x16xf32>
    %cst_15 = arith.constant dense<0.000000e+00> : vector<1xf32>
    %31 = vector.multi_reduction <add>, %30, %cst_15 [1] : vector<1x16xf32> to vector<1xf32>
    %32 = vector.shape_cast %31 : vector<1xf32> to vector<1x1xf32>
    %33 = vector.broadcast %32 : vector<1x1xf32> to vector<1x16xf32>
    %34 = arith.divf %30, %33 : vector<1x16xf32>
    %c0_16 = arith.constant 0 : index
    %c0_17 = arith.constant 0 : index
    %c0_18 = arith.constant 0 : index
    %35 = vector.load %arg16[%c0_16, %c0_17, %c0_18] : memref<1x1x16xf32, #tpu.memory_space<vmem>>, vector<1x1x16xf32>
    %36 = vector.shape_cast %35 : vector<1x1x16xf32> to vector<1x16xf32>
    %37 = vector.shape_cast %34 : vector<1x16xf32> to vector<1x1x16xf32>
    tpu.vector_store %arg16[%c0_16, %c0_17, %c0_18], %37 {strides = array<i32>} : memref<1x1x16xf32, #tpu.memory_space<vmem>>, vector<1x1x16xf32>,
    %c0_19 = arith.constant 0 : index
    %c0_20 = arith.constant 0 : index
    %38 = vector.load %arg4[%c0_19, %c0_20] : memref<16x32xf32, #tpu.memory_space<vmem>>, vector<16x32xf32>
    %cst_21 = arith.constant dense<0.000000e+00> : vector<1x32xf32>
    %39 = tpu.matmul %34, %38, %cst_21 {dimension_numbers = #tpu.dot_dimension_numbers<[1], [0], [0], [1], [0, 0, 1, 1], [], []>} : vector<1x16xf32>, vector<16x32xf32>, vector<1x32xf32> -> vector<1x32xf32>
    %c0_22 = arith.constant 0 : index
    %c0_23 = arith.constant 0 : index
    %40 = vector.load %arg8[%c0_22, %c0_23] : memref<32x32xf32, #tpu.memory_space<vmem>>, vector<32x32xf32>
    %cst_24 = arith.constant dense<0.000000e+00> : vector<1x32xf32>
    %41 = tpu.matmul %39, %40, %cst_24 {dimension_numbers = #tpu.dot_dimension_numbers<[1], [0], [0], [1], [0, 0, 1, 1], [], []>} : vector<1x32xf32>, vector<32x32xf32>, vector<1x32xf32> -> vector<1x32xf32>
    %42 = arith.addf %22, %41 : vector<1x32xf32>
    %c0_25 = arith.constant 0 : index
    %c0_26 = arith.constant 0 : index
    %43 = vector.load %arg9[%c0_25, %c0_26] : memref<1x32xf32, #tpu.memory_space<vmem>>, vector<1x32xf32>
    %44 = arith.addf %42, %43 : vector<1x32xf32>
    %cst_27 = arith.constant 0.000000e+00 : f32
    %45 = vector.broadcast %cst_27 : f32 to vector<1x32xf32>
    %46 = arith.maximumf %44, %45 : vector<1x32xf32>
    %47 = vector.extract_strided_slice %3 {offsets = [0, 0], sizes = [1, 32], strides = [1, 1]} : vector<1x128xf32> to vector<1x32xf32>
    %c0_28 = arith.constant 0 : index
    %c0_29 = arith.constant 0 : index
    %c0_30 = arith.constant 0 : index
    %48 = vector.load %arg10[%c0_28, %c0_29, %c0_30] : memref<4x32x96xf32, #tpu.memory_space<vmem>>, vector<1x32x96xf32>
    %49 = vector.shape_cast %48 : vector<1x32x96xf32> to vector<32x96xf32>
    %cst_31 = arith.constant dense<0.000000e+00> : vector<1x96xf32>
    %50 = tpu.matmul %46, %49, %cst_31 {dimension_numbers = #tpu.dot_dimension_numbers<[1], [0], [0], [1], [0, 0, 1, 1], [], []>} : vector<1x32xf32>, vector<32x96xf32>, vector<1x96xf32> -> vector<1x96xf32>
    %c0_32 = arith.constant 0 : index
    %c0_33 = arith.constant 0 : index
    %51 = vector.load %arg11[%c0_32, %c0_33] : memref<4x96xf32, #tpu.memory_space<vmem>>, vector<1x96xf32>
    %52 = arith.addf %50, %51 : vector<1x96xf32>
    %53 = vector.extract_strided_slice %18 {offsets = [0, 0], sizes = [1, 96], strides = [1, 1]} : vector<1x384xf32> to vector<1x96xf32>
    %54 = vector.extract_strided_slice %52 {offsets = [0, 0], sizes = [1, 32], strides = [1, 1]} : vector<1x96xf32> to vector<1x32xf32>
    %55 = vector.extract_strided_slice %53 {offsets = [0, 0], sizes = [1, 32], strides = [1, 1]} : vector<1x96xf32> to vector<1x32xf32>
    %56 = arith.addf %54, %55 : vector<1x32xf32>
    %57 = arith.negf %56 : vector<1x32xf32>
    %58 = math.exp %57 : vector<1x32xf32>
    %cst_34 = arith.constant 1.000000e+00 : f32
    %59 = vector.broadcast %cst_34 : f32 to vector<1x32xf32>
    %60 = arith.addf %59, %58 : vector<1x32xf32>
    %61 = arith.divf %59, %60 : vector<1x32xf32>
    %62 = vector.extract_strided_slice %52 {offsets = [0, 32], sizes = [1, 32], strides = [1, 1]} : vector<1x96xf32> to vector<1x32xf32>
    %63 = vector.extract_strided_slice %53 {offsets = [0, 32], sizes = [1, 32], strides = [1, 1]} : vector<1x96xf32> to vector<1x32xf32>
    %64 = arith.addf %62, %63 : vector<1x32xf32>
    %65 = arith.negf %64 : vector<1x32xf32>
    %66 = math.exp %65 : vector<1x32xf32>
    %cst_35 = arith.constant 1.000000e+00 : f32
    %67 = vector.broadcast %cst_35 : f32 to vector<1x32xf32>
    %68 = arith.addf %67, %66 : vector<1x32xf32>
    %69 = arith.divf %67, %68 : vector<1x32xf32>
    %70 = vector.extract_strided_slice %52 {offsets = [0, 64], sizes = [1, 32], strides = [1, 1]} : vector<1x96xf32> to vector<1x32xf32>
    %71 = vector.extract_strided_slice %53 {offsets = [0, 64], sizes = [1, 32], strides = [1, 1]} : vector<1x96xf32> to vector<1x32xf32>
    %72 = arith.mulf %61, %71 : vector<1x32xf32>
    %73 = arith.addf %70, %72 : vector<1x32xf32>
    %74 = math.tanh %73 : vector<1x32xf32>
    %cst_36 = arith.constant 1.000000e+00 : f32
    %75 = vector.broadcast %cst_36 : f32 to vector<1x32xf32>
    %76 = arith.subf %75, %69 : vector<1x32xf32>
    %77 = arith.mulf %76, %74 : vector<1x32xf32>
    %78 = arith.mulf %69, %47 : vector<1x32xf32>
    %79 = arith.addf %77, %78 : vector<1x32xf32>
    %80 = vector.extract_strided_slice %3 {offsets = [0, 32], sizes = [1, 32], strides = [1, 1]} : vector<1x128xf32> to vector<1x32xf32>
    %c1 = arith.constant 1 : index
    %c0_37 = arith.constant 0 : index
    %c0_38 = arith.constant 0 : index
    %81 = vector.load %arg10[%c1, %c0_37, %c0_38] : memref<4x32x96xf32, #tpu.memory_space<vmem>>, vector<1x32x96xf32>
    %82 = vector.shape_cast %81 : vector<1x32x96xf32> to vector<32x96xf32>
    %cst_39 = arith.constant dense<0.000000e+00> : vector<1x96xf32>
    %83 = tpu.matmul %79, %82, %cst_39 {dimension_numbers = #tpu.dot_dimension_numbers<[1], [0], [0], [1], [0, 0, 1, 1], [], []>} : vector<1x32xf32>, vector<32x96xf32>, vector<1x96xf32> -> vector<1x96xf32>
    %c1_40 = arith.constant 1 : index
    %c0_41 = arith.constant 0 : index
    %84 = vector.load %arg11[%c1_40, %c0_41] : memref<4x96xf32, #tpu.memory_space<vmem>>, vector<1x96xf32>
    %85 = arith.addf %83, %84 : vector<1x96xf32>
    %86 = vector.extract_strided_slice %18 {offsets = [0, 96], sizes = [1, 96], strides = [1, 1]} : vector<1x384xf32> to vector<1x96xf32>
    %87 = vector.extract_strided_slice %85 {offsets = [0, 0], sizes = [1, 32], strides = [1, 1]} : vector<1x96xf32> to vector<1x32xf32>
    %88 = vector.extract_strided_slice %86 {offsets = [0, 0], sizes = [1, 32], strides = [1, 1]} : vector<1x96xf32> to vector<1x32xf32>
    %89 = arith.addf %87, %88 : vector<1x32xf32>
    %90 = arith.negf %89 : vector<1x32xf32>
    %91 = math.exp %90 : vector<1x32xf32>
    %cst_42 = arith.constant 1.000000e+00 : f32
    %92 = vector.broadcast %cst_42 : f32 to vector<1x32xf32>
    %93 = arith.addf %92, %91 : vector<1x32xf32>
    %94 = arith.divf %92, %93 : vector<1x32xf32>
    %95 = vector.extract_strided_slice %85 {offsets = [0, 32], sizes = [1, 32], strides = [1, 1]} : vector<1x96xf32> to vector<1x32xf32>
    %96 = vector.extract_strided_slice %86 {offsets = [0, 32], sizes = [1, 32], strides = [1, 1]} : vector<1x96xf32> to vector<1x32xf32>
    %97 = arith.addf %95, %96 : vector<1x32xf32>
    %98 = arith.negf %97 : vector<1x32xf32>
    %99 = math.exp %98 : vector<1x32xf32>
    %cst_43 = arith.constant 1.000000e+00 : f32
    %100 = vector.broadcast %cst_43 : f32 to vector<1x32xf32>
    %101 = arith.addf %100, %99 : vector<1x32xf32>
    %102 = arith.divf %100, %101 : vector<1x32xf32>
    %103 = vector.extract_strided_slice %85 {offsets = [0, 64], sizes = [1, 32], strides = [1, 1]} : vector<1x96xf32> to vector<1x32xf32>
    %104 = vector.extract_strided_slice %86 {offsets = [0, 64], sizes = [1, 32], strides = [1, 1]} : vector<1x96xf32> to vector<1x32xf32>
    %105 = arith.mulf %94, %104 : vector<1x32xf32>
    %106 = arith.addf %103, %105 : vector<1x32xf32>
    %107 = math.tanh %106 : vector<1x32xf32>
    %cst_44 = arith.constant 1.000000e+00 : f32
    %108 = vector.broadcast %cst_44 : f32 to vector<1x32xf32>
    %109 = arith.subf %108, %102 : vector<1x32xf32>
    %110 = arith.mulf %109, %107 : vector<1x32xf32>
    %111 = arith.mulf %102, %80 : vector<1x32xf32>
    %112 = arith.addf %110, %111 : vector<1x32xf32>
    %113 = vector.extract_strided_slice %3 {offsets = [0, 64], sizes = [1, 32], strides = [1, 1]} : vector<1x128xf32> to vector<1x32xf32>
    %c2 = arith.constant 2 : index
    %c0_45 = arith.constant 0 : index
    %c0_46 = arith.constant 0 : index
    %114 = vector.load %arg10[%c2, %c0_45, %c0_46] : memref<4x32x96xf32, #tpu.memory_space<vmem>>, vector<1x32x96xf32>
    %115 = vector.shape_cast %114 : vector<1x32x96xf32> to vector<32x96xf32>
    %cst_47 = arith.constant dense<0.000000e+00> : vector<1x96xf32>
    %116 = tpu.matmul %112, %115, %cst_47 {dimension_numbers = #tpu.dot_dimension_numbers<[1], [0], [0], [1], [0, 0, 1, 1], [], []>} : vector<1x32xf32>, vector<32x96xf32>, vector<1x96xf32> -> vector<1x96xf32>
    %c2_48 = arith.constant 2 : index
    %c0_49 = arith.constant 0 : index
    %117 = vector.load %arg11[%c2_48, %c0_49] : memref<4x96xf32, #tpu.memory_space<vmem>>, vector<1x96xf32>
    %118 = arith.addf %116, %117 : vector<1x96xf32>
    %119 = vector.extract_strided_slice %18 {offsets = [0, 192], sizes = [1, 96], strides = [1, 1]} : vector<1x384xf32> to vector<1x96xf32>
    %120 = vector.extract_strided_slice %118 {offsets = [0, 0], sizes = [1, 32], strides = [1, 1]} : vector<1x96xf32> to vector<1x32xf32>
    %121 = vector.extract_strided_slice %119 {offsets = [0, 0], sizes = [1, 32], strides = [1, 1]} : vector<1x96xf32> to vector<1x32xf32>
    %122 = arith.addf %120, %121 : vector<1x32xf32>
    %123 = arith.negf %122 : vector<1x32xf32>
    %124 = math.exp %123 : vector<1x32xf32>
    %cst_50 = arith.constant 1.000000e+00 : f32
    %125 = vector.broadcast %cst_50 : f32 to vector<1x32xf32>
    %126 = arith.addf %125, %124 : vector<1x32xf32>
    %127 = arith.divf %125, %126 : vector<1x32xf32>
    %128 = vector.extract_strided_slice %118 {offsets = [0, 32], sizes = [1, 32], strides = [1, 1]} : vector<1x96xf32> to vector<1x32xf32>
    %129 = vector.extract_strided_slice %119 {offsets = [0, 32], sizes = [1, 32], strides = [1, 1]} : vector<1x96xf32> to vector<1x32xf32>
    %130 = arith.addf %128, %129 : vector<1x32xf32>
    %131 = arith.negf %130 : vector<1x32xf32>
    %132 = math.exp %131 : vector<1x32xf32>
    %cst_51 = arith.constant 1.000000e+00 : f32
    %133 = vector.broadcast %cst_51 : f32 to vector<1x32xf32>
    %134 = arith.addf %133, %132 : vector<1x32xf32>
    %135 = arith.divf %133, %134 : vector<1x32xf32>
    %136 = vector.extract_strided_slice %118 {offsets = [0, 64], sizes = [1, 32], strides = [1, 1]} : vector<1x96xf32> to vector<1x32xf32>
    %137 = vector.extract_strided_slice %119 {offsets = [0, 64], sizes = [1, 32], strides = [1, 1]} : vector<1x96xf32> to vector<1x32xf32>
    %138 = arith.mulf %127, %137 : vector<1x32xf32>
    %139 = arith.addf %136, %138 : vector<1x32xf32>
    %140 = math.tanh %139 : vector<1x32xf32>
    %cst_52 = arith.constant 1.000000e+00 : f32
    %141 = vector.broadcast %cst_52 : f32 to vector<1x32xf32>
    %142 = arith.subf %141, %135 : vector<1x32xf32>
    %143 = arith.mulf %142, %140 : vector<1x32xf32>
    %144 = arith.mulf %135, %113 : vector<1x32xf32>
    %145 = arith.addf %143, %144 : vector<1x32xf32>
    %146 = vector.extract_strided_slice %3 {offsets = [0, 96], sizes = [1, 32], strides = [1, 1]} : vector<1x128xf32> to vector<1x32xf32>
    %c3 = arith.constant 3 : index
    %c0_53 = arith.constant 0 : index
    %c0_54 = arith.constant 0 : index
    %147 = vector.load %arg10[%c3, %c0_53, %c0_54] : memref<4x32x96xf32, #tpu.memory_space<vmem>>, vector<1x32x96xf32>
    %148 = vector.shape_cast %147 : vector<1x32x96xf32> to vector<32x96xf32>
    %cst_55 = arith.constant dense<0.000000e+00> : vector<1x96xf32>
    %149 = tpu.matmul %145, %148, %cst_55 {dimension_numbers = #tpu.dot_dimension_numbers<[1], [0], [0], [1], [0, 0, 1, 1], [], []>} : vector<1x32xf32>, vector<32x96xf32>, vector<1x96xf32> -> vector<1x96xf32>
    %c3_56 = arith.constant 3 : index
    %c0_57 = arith.constant 0 : index
    %150 = vector.load %arg11[%c3_56, %c0_57] : memref<4x96xf32, #tpu.memory_space<vmem>>, vector<1x96xf32>
    %151 = arith.addf %149, %150 : vector<1x96xf32>
    %152 = vector.extract_strided_slice %18 {offsets = [0, 288], sizes = [1, 96], strides = [1, 1]} : vector<1x384xf32> to vector<1x96xf32>
    %153 = vector.extract_strided_slice %151 {offsets = [0, 0], sizes = [1, 32], strides = [1, 1]} : vector<1x96xf32> to vector<1x32xf32>
    %154 = vector.extract_strided_slice %152 {offsets = [0, 0], sizes = [1, 32], strides = [1, 1]} : vector<1x96xf32> to vector<1x32xf32>
    %155 = arith.addf %153, %154 : vector<1x32xf32>
    %156 = arith.negf %155 : vector<1x32xf32>
    %157 = math.exp %156 : vector<1x32xf32>
    %cst_58 = arith.constant 1.000000e+00 : f32
    %158 = vector.broadcast %cst_58 : f32 to vector<1x32xf32>
    %159 = arith.addf %158, %157 : vector<1x32xf32>
    %160 = arith.divf %158, %159 : vector<1x32xf32>
    %161 = vector.extract_strided_slice %151 {offsets = [0, 32], sizes = [1, 32], strides = [1, 1]} : vector<1x96xf32> to vector<1x32xf32>
    %162 = vector.extract_strided_slice %152 {offsets = [0, 32], sizes = [1, 32], strides = [1, 1]} : vector<1x96xf32> to vector<1x32xf32>
    %163 = arith.addf %161, %162 : vector<1x32xf32>
    %164 = arith.negf %163 : vector<1x32xf32>
    %165 = math.exp %164 : vector<1x32xf32>
    %cst_59 = arith.constant 1.000000e+00 : f32
    %166 = vector.broadcast %cst_59 : f32 to vector<1x32xf32>
    %167 = arith.addf %166, %165 : vector<1x32xf32>
    %168 = arith.divf %166, %167 : vector<1x32xf32>
    %169 = vector.extract_strided_slice %151 {offsets = [0, 64], sizes = [1, 32], strides = [1, 1]} : vector<1x96xf32> to vector<1x32xf32>
    %170 = vector.extract_strided_slice %152 {offsets = [0, 64], sizes = [1, 32], strides = [1, 1]} : vector<1x96xf32> to vector<1x32xf32>
    %171 = arith.mulf %160, %170 : vector<1x32xf32>
    %172 = arith.addf %169, %171 : vector<1x32xf32>
    %173 = math.tanh %172 : vector<1x32xf32>
    %cst_60 = arith.constant 1.000000e+00 : f32
    %174 = vector.broadcast %cst_60 : f32 to vector<1x32xf32>
    %175 = arith.subf %174, %168 : vector<1x32xf32>
    %176 = arith.mulf %175, %173 : vector<1x32xf32>
    %177 = arith.mulf %168, %146 : vector<1x32xf32>
    %178 = arith.addf %176, %177 : vector<1x32xf32>
    %179 = tpu.concatenate %79, %112, %145, %178 in 1 : vector<1x32xf32>, vector<1x32xf32>, vector<1x32xf32>, vector<1x32xf32> -> vector<1x128xf32>
    %c0_61 = arith.constant 0 : index
    %c0_62 = arith.constant 0 : index
    %180 = vector.load %arg18[%c0_61, %c0_62] : memref<1x128xf32, #tpu.memory_space<vmem>>, vector<1x128xf32>
    tpu.vector_store %arg18[%c0_61, %c0_62], %179 {strides = array<i32>} : memref<1x128xf32, #tpu.memory_space<vmem>>, vector<1x128xf32>,
    %c0_63 = arith.constant 0 : index
    %c0_64 = arith.constant 0 : index
    %181 = vector.load %arg13[%c0_63, %c0_64] : memref<32x48xf32, #tpu.memory_space<vmem>>, vector<32x48xf32>
    %cst_65 = arith.constant dense<0.000000e+00> : vector<1x48xf32>
    %182 = tpu.matmul %178, %181, %cst_65 {dimension_numbers = #tpu.dot_dimension_numbers<[1], [0], [0], [1], [0, 0, 1, 1], [], []>} : vector<1x32xf32>, vector<32x48xf32>, vector<1x48xf32> -> vector<1x48xf32>
    %c0_66 = arith.constant 0 : index
    %c0_67 = arith.constant 0 : index
    %183 = vector.load %arg14[%c0_66, %c0_67] : memref<1x48xf32, #tpu.memory_space<vmem>>, vector<1x48xf32>
    %184 = arith.addf %182, %183 : vector<1x48xf32>
    %cst_68 = arith.constant dense<0xFF800000> : vector<1xf32>
    %185 = vector.multi_reduction <maximumf>, %184, %cst_68 [1] : vector<1x48xf32> to vector<1xf32>
    %186 = vector.shape_cast %185 : vector<1xf32> to vector<1x1xf32>
    %187 = vector.broadcast %186 : vector<1x1xf32> to vector<1x48xf32>
    %188 = arith.subf %184, %187 : vector<1x48xf32>
    %189 = math.exp %188 : vector<1x48xf32>
    %cst_69 = arith.constant dense<0.000000e+00> : vector<1xf32>
    %190 = vector.multi_reduction <add>, %189, %cst_69 [1] : vector<1x48xf32> to vector<1xf32>
    %191 = vector.shape_cast %190 : vector<1xf32> to vector<1x1xf32>
    %192 = math.log %191 : vector<1x1xf32>
    %193 = arith.addf %192, %186 : vector<1x1xf32>
    %194 = vector.broadcast %193 : vector<1x1xf32> to vector<1x48xf32>
    %195 = arith.subf %184, %194 : vector<1x48xf32>
    %c0_70 = arith.constant 0 : index
    %c0_71 = arith.constant 0 : index
    %c0_72 = arith.constant 0 : index
    %196 = vector.load %arg15[%c0_70, %c0_71, %c0_72] : memref<1x1x48xf32, #tpu.memory_space<vmem>>, vector<1x1x48xf32>
    %197 = vector.shape_cast %196 : vector<1x1x48xf32> to vector<1x48xf32>
    %198 = vector.shape_cast %195 : vector<1x48xf32> to vector<1x1x48xf32>
    tpu.vector_store %arg15[%c0_70, %c0_71, %c0_72], %198 {strides = array<i32>} : memref<1x1x48xf32, #tpu.memory_space<vmem>>, vector<1x1x48xf32>,
    %c5_i32 = arith.constant 5 : i32
    %199 = arith.cmpi eq, %arg0, %c5_i32 : i32
    %200 = arith.extui %199 : i1 to i32
    %c0_i32_73 = arith.constant 0 : i32
    %201 = arith.cmpi ne, %200, %c0_i32_73 : i32
    scf.if %201 {
      %c0_74 = arith.constant 0 : index
      %c0_75 = arith.constant 0 : index
      %202 = vector.load %arg18[%c0_74, %c0_75] : memref<1x128xf32, #tpu.memory_space<vmem>>, vector<1x128xf32>
      %c0_76 = arith.constant 0 : index
      %c0_77 = arith.constant 0 : index
      %203 = vector.load %arg17[%c0_76, %c0_77] : memref<1x128xf32, #tpu.memory_space<vmem>>, vector<1x128xf32>
      tpu.vector_store %arg17[%c0_76, %c0_77], %202 {strides = array<i32>} : memref<1x128xf32, #tpu.memory_space<vmem>>, vector<1x128xf32>,
    } else {
    }
    return
  }
  func.func @transform_0(%arg0: i32, %arg1: memref<6xi32, #tpu.memory_space<smem>>) -> (i32, i32) {
    %c0_i32 = arith.constant 0 : i32
    %c0_i32_0 = arith.constant 0 : i32
    %c0_i32_1 = arith.constant 0 : i32
    return %c0_i32, %c0_i32_0 : i32, i32
  }
  func.func @transform_1(%arg0: i32, %arg1: memref<6xi32, #tpu.memory_space<smem>>) -> (i32, i32) {
    %c0_i32 = arith.constant 0 : i32
    %c0_i32_0 = arith.constant 0 : i32
    %c0_i32_1 = arith.constant 0 : i32
    return %c0_i32, %c0_i32_0 : i32, i32
  }
  func.func @transform_2(%arg0: i32, %arg1: memref<6xi32, #tpu.memory_space<smem>>) -> (i32, i32) {
    %c0_i32 = arith.constant 0 : i32
    %c0_i32_0 = arith.constant 0 : i32
    %c0_i32_1 = arith.constant 0 : i32
    return %c0_i32, %c0_i32_0 : i32, i32
  }
  func.func @transform_3(%arg0: i32, %arg1: memref<6xi32, #tpu.memory_space<smem>>) -> (i32, i32) {
    %c0_i32 = arith.constant 0 : i32
    %c0_i32_0 = arith.constant 0 : i32
    %c0_i32_1 = arith.constant 0 : i32
    return %c0_i32, %c0_i32_0 : i32, i32
  }
  func.func @transform_4(%arg0: i32, %arg1: memref<6xi32, #tpu.memory_space<smem>>) -> (i32, i32) {
    %c0_i32 = arith.constant 0 : i32
    %c0_i32_0 = arith.constant 0 : i32
    %c0_i32_1 = arith.constant 0 : i32
    return %c0_i32, %c0_i32_0 : i32, i32
  }
  func.func @transform_5(%arg0: i32, %arg1: memref<6xi32, #tpu.memory_space<smem>>) -> (i32, i32) {
    %c0_i32 = arith.constant 0 : i32
    %c0_i32_0 = arith.constant 0 : i32
    %c0_i32_1 = arith.constant 0 : i32
    return %c0_i32, %c0_i32_0 : i32, i32
  }
  func.func @transform_6(%arg0: i32, %arg1: memref<6xi32, #tpu.memory_space<smem>>) -> (i32, i32) {
    %c0_i32 = arith.constant 0 : i32
    %c0_i32_0 = arith.constant 0 : i32
    %c0_i32_1 = arith.constant 0 : i32
    return %c0_i32, %c0_i32_0 : i32, i32
  }
  func.func @transform_7(%arg0: i32, %arg1: memref<6xi32, #tpu.memory_space<smem>>) -> (i32, i32) {
    %c0_i32 = arith.constant 0 : i32
    %c0_i32_0 = arith.constant 0 : i32
    %c0_i32_1 = arith.constant 0 : i32
    return %c0_i32, %c0_i32_0 : i32, i32
  }
  func.func @transform_8(%arg0: i32, %arg1: memref<6xi32, #tpu.memory_space<smem>>) -> (i32, i32, i32) {
    %c0_i32 = arith.constant 0 : i32
    %c0_i32_0 = arith.constant 0 : i32
    %c0_i32_1 = arith.constant 0 : i32
    %c0_i32_2 = arith.constant 0 : i32
    return %c0_i32, %c0_i32_0, %c0_i32_1 : i32, i32, i32
  }
  func.func @transform_9(%arg0: i32, %arg1: memref<6xi32, #tpu.memory_space<smem>>) -> (i32, i32) {
    %c0_i32 = arith.constant 0 : i32
    %c0_i32_0 = arith.constant 0 : i32
    %c0_i32_1 = arith.constant 0 : i32
    return %c0_i32, %c0_i32_0 : i32, i32
  }
  func.func @transform_10(%arg0: i32, %arg1: memref<6xi32, #tpu.memory_space<smem>>) -> (i32, i32) {
    %c0_i32 = arith.constant 0 : i32
    %c0_i32_0 = arith.constant 0 : i32
    %c0_i32_1 = arith.constant 0 : i32
    return %c0_i32, %c0_i32_0 : i32, i32
  }
  func.func @transform_11(%arg0: i32, %arg1: memref<6xi32, #tpu.memory_space<smem>>) -> (i32, i32) {
    %c0_i32 = arith.constant 0 : i32
    %c0_i32_0 = arith.constant 0 : i32
    %c0_i32_1 = arith.constant 0 : i32
    return %c0_i32, %c0_i32_0 : i32, i32
  }
  func.func @transform_12(%arg0: i32, %arg1: memref<6xi32, #tpu.memory_space<smem>>) -> (i32, i32) {
    %c0_i32 = arith.constant 0 : i32
    %c0_i32_0 = arith.constant 0 : i32
    %c0_i32_1 = arith.constant 0 : i32
    return %c0_i32, %c0_i32_0 : i32, i32
  }
  func.func @transform_13(%arg0: i32, %arg1: memref<6xi32, #tpu.memory_space<smem>>) -> (i32, i32, i32) {
    %c0_i32 = arith.constant 0 : i32
    %c0_i32_0 = arith.constant 0 : i32
    %c0_i32_1 = arith.constant 0 : i32
    return %arg0, %c0_i32, %c0_i32_0 : i32, i32, i32
  }
  func.func @transform_14(%arg0: i32, %arg1: memref<6xi32, #tpu.memory_space<smem>>) -> (i32, i32, i32) {
    %c0_i32 = arith.constant 0 : i32
    %c0_i32_0 = arith.constant 0 : i32
    %c0_i32_1 = arith.constant 0 : i32
    return %arg0, %c0_i32, %c0_i32_0 : i32, i32, i32
  }
  func.func @transform_15(%arg0: i32, %arg1: memref<6xi32, #tpu.memory_space<smem>>) -> (i32, i32) {
    %c0_i32 = arith.constant 0 : i32
    %c0_i32_0 = arith.constant 0 : i32
    %c0_i32_1 = arith.constant 0 : i32
    return %c0_i32, %c0_i32_0 : i32, i32
  }
}

</mosaic_0001>

<llo_original>
// kernel: tpu_custom_call.1
$region0: #{tpu_custom_call.1}
  #allocation0 [shape = 'u32[]', space=smem, size = 0x4, offset = 0x4, fixed_abs, tag = 'smem constant byte address 0x4 - core index']
  #allocation1 [shape = 'u32[72,128]{1,0:T(1,128)}', space=vmem, size = 0x9000, scoped, tag = 'internal scratch']
  #allocation2 [shape = 'f32[1,128]{1,0:T(1,128)}', space=vmem, size = 0x200, scoped, tag = 'scratch operand']
  #allocation3 [shape = 's32[1]{0}', space=sflag, size = 0x4, scoped, tag = 'scoped memory for tpu_custom_call.1']
  #allocation4 [shape = 'u8[512]{0}', space=smem, size = 0x200, scoped, tag = 'prefetched SMEM operand 0']
  %s0 = inlined_call_operand.vmem [shape: s32[6], index: 0, kind: input, shape index: {}]
  %s1 = inlined_call_operand.vmem [shape: f32[48,32], index: 1, kind: input, shape index: {}]
  %s2 = inlined_call_operand.vmem [shape: f32[1,128], index: 2, kind: input, shape index: {}]
  %s3 = inlined_call_operand.vmem [shape: f32[16,32], index: 3, kind: input, shape index: {}]
  %s4 = inlined_call_operand.vmem [shape: f32[32,48], index: 4, kind: input, shape index: {}]
  %s5 = inlined_call_operand.vmem [shape: f32[1,16], index: 5, kind: input, shape index: {}]
  %s6 = inlined_call_operand.vmem [shape: f32[128,400], index: 6, kind: input, shape index: {}]
  %s7 = inlined_call_operand.vmem [shape: f32[32,32], index: 7, kind: input, shape index: {}]
  %s8 = inlined_call_operand.vmem [shape: f32[1,32], index: 8, kind: input, shape index: {}]
  %s9 = inlined_call_operand.vmem [shape: f32[4,32,96], index: 9, kind: input, shape index: {}]
  %s10 = inlined_call_operand.vmem [shape: f32[4,96], index: 10, kind: input, shape index: {}]
  %s11 = inlined_call_operand.vmem [shape: f32[1,384], index: 11, kind: input, shape index: {}]
  %s12 = inlined_call_operand.vmem [shape: f32[32,48], index: 12, kind: input, shape index: {}]
  %s13 = inlined_call_operand.vmem [shape: f32[1,48], index: 13, kind: input, shape index: {}]
  %s14 = inlined_call_operand.hbm [shape: f32[6,1,48], index: 14, kind: output, shape index: {0}]
  %s15 = inlined_call_operand.hbm [shape: f32[6,1,16], index: 15, kind: output, shape index: {1}]
  %s16 = inlined_call_operand.hbm [shape: f32[1,128], index: 16, kind: output, shape index: {2}]
  %17 = xla_tuple %s14, %s15, %s16
  %s18 = sld [smem:[#allocation0]]
  $region109: #{tpu_custom_call.1} parent=0
    _
  %s20 = ssub.s32 1, %s18
  %s21 = scalar_select 0, %s20, %s18
  %s23 = sshll.u32 %s0, 4
  %s24 = int_to_ptr.vmem [resolvable:$true] %s23
  %26 = dma.vmem_to_smem %s24, 16, [#allocation4], [#allocation3]
  %28 = dma.done [#allocation3], 16
  %29 = sfence
  $region1: #{tpu_custom_call.1} parent=0
    #allocation5 [shape = 'u8[1024]{0}', space=vmem, size = 0x400, scoped, tag = 'output window, operand 0']
    #allocation6 [shape = 's32[2]{0}', space=sflag, size = 0x8, scoped, tag = 'scoped memory for tpu_custom_call.1']
    #allocation7 [shape = 'u8[1024]{0}', space=vmem, size = 0x400, scoped, tag = 'output window, operand 1']
    #allocation8 [shape = 's32[2]{0}', space=sflag, size = 0x8, scoped, tag = 'scoped memory for tpu_custom_call.1']
    #allocation9 [shape = 'u8[512]{0}', space=vmem, size = 0x400, scoped, tag = 'output window, operand 2, single buffered']
    %30 = vsyncpa [#allocation6], 0
    %s31 = scalar_lea.sflag [#allocation6], 1
    %32 = vsyncpa %s31, 0
    %33 = vsyncpa [#allocation8], 0
    %s34 = scalar_lea.sflag [#allocation8], 1
    %35 = vsyncpa %s34, 0
    loop: start=0, step=1, limit=8
    $region2: #{tpu_custom_call.1} parent=1 // loop_pre_header
      _
    $region3: #{tpu_custom_call.1} parent=1 // loop_header
      %s37 = sphi 0, %s41
      %p38 = scmp.ge.s32.totalorder %s37, 8
      %s45 = sphi 0, %s45
      %s47 = sphi 0, %s45
      %s48 = sphi 0, %s47
      %s62 = sphi 0, %s48
      %s66 = sphi 0, %s66
      %s68 = sphi 0, %s66
      %s69 = sphi 0, %s68
      %s83 = sphi 0, %s69
      %s87 = sphi 0, %s87
      %s89 = sphi 0, %s87
      %s90 = sphi 0, %s89
      %s104 = sphi 0, %s90
      %s108 = sphi 0, %s108
      %s110 = sphi 0, %s108
      %s111 = sphi 0, %s110
      %s125 = sphi 0, %s111
      %s129 = sphi 0, %s129
      %s131 = sphi 0, %s129
      %s132 = sphi 0, %s131
      %s146 = sphi 0, %s132
      %s150 = sphi 0, %s150
      %s152 = sphi 0, %s150
      %s153 = sphi 0, %s152
      %s167 = sphi 0, %s153
      %s171 = sphi 0, %s171
      %s173 = sphi 0, %s171
      %s174 = sphi 0, %s173
      %s188 = sphi 0, %s174
      %s192 = sphi 0, %s192
      %s194 = sphi 0, %s192
      %s195 = sphi 0, %s194
      %s209 = sphi 0, %s195
      %s213 = sphi 0, %s213
      %s215 = sphi 0, %s213
      %s216 = sphi 0, %s215
      %s230 = sphi 0, %s216
      %s234 = sphi 0, %s234
      %s236 = sphi 0, %s234
      %s237 = sphi 0, %s236
      %s251 = sphi 0, %s237
      %s255 = sphi 0, %s255
      %s257 = sphi 0, %s255
      %s258 = sphi 0, %s257
      %s272 = sphi 0, %s258
      %s276 = sphi 0, %s276
      %s278 = sphi 0, %s276
      %s279 = sphi 0, %s278
      %s293 = sphi 0, %s279
      %s297 = sphi 0, %s297
      %s299 = sphi 0, %s297
      %s300 = sphi 0, %s299
      %s314 = sphi 0, %s300
      %s320 = sphi 0, %s322
      %s323 = sphi 0, %s320
      %s324 = sphi 0, %s323
      %s340 = sphi 0, %s324
      %s346 = sphi 0, %s348
      %s349 = sphi 0, %s346
      %s350 = sphi 0, %s349
      %s366 = sphi 0, %s350
      %s370 = sphi 0, %s370
      %s372 = sphi 0, %s370
      %s373 = sphi 0, %s372
      %s387 = sphi 0, %s373
    $region4: #{tpu_custom_call.1} parent=1 // loop_header_branch
      %40 = sbr.rel (%p38) target = $region8
    $region5: #{tpu_custom_call.1} parent=1 // loop_body
      %s42 = ssub.s32 %s37, 1
      %s43 = ssub.s32 %s37, 2
      %s44 = sadd.s32 %s37, 1
      %s46 = sadd.s32 %s45, 1
      %p49 = scmp.eq.s32.totalorder %s37, 5
      %p50 = scmp.ne.s32.totalorder %s45, %s47
      %p51 = scmp.eq.s32.totalorder %s37, 0
      %p52 = por %p50, %p51
      %p53 = scmp.ne.s32.totalorder %s45, %s47
      %p54 = scmp.eq.s32.totalorder %s42, 5
      %p55 = por %p53, %p54
      %p56 = scmp.ne.s32.totalorder %s47, %s48
      %p57 = scmp.eq.s32.totalorder %s42, 0
      %p58 = por %p56, %p57
      %p59 = scmp.ne.s32.totalorder %s47, %s48
      %p60 = scmp.eq.s32.totalorder %s43, 5
      %p61 = por %p59, %p60
      %p63 = scmp.ne.s32.totalorder %s48, %s62
      %p64 = scmp.eq.s32.totalorder %s43, 0
      %p65 = por %p63, %p64
      %s67 = sadd.s32 %s66, 1
      %p70 = scmp.eq.s32.totalorder %s37, 5
      %p71 = scmp.ne.s32.totalorder %s66, %s68
      %p72 = scmp.eq.s32.totalorder %s37, 0
      %p73 = por %p71, %p72
      %p74 = scmp.ne.s32.totalorder %s66, %s68
      %p75 = scmp.eq.s32.totalorder %s42, 5
      %p76 = por %p74, %p75
      %p77 = scmp.ne.s32.totalorder %s68, %s69
      %p78 = scmp.eq.s32.totalorder %s42, 0
      %p79 = por %p77, %p78
      %p80 = scmp.ne.s32.totalorder %s68, %s69
      %p81 = scmp.eq.s32.totalorder %s43, 5
      %p82 = por %p80, %p81
      %p84 = scmp.ne.s32.totalorder %s69, %s83
      %p85 = scmp.eq.s32.totalorder %s43, 0
      %p86 = por %p84, %p85
      %s88 = sadd.s32 %s87, 1
      %p91 = scmp.eq.s32.totalorder %s37, 5
      %p92 = scmp.ne.s32.totalorder %s87, %s89
      %p93 = scmp.eq.s32.totalorder %s37, 0
      %p94 = por %p92, %p93
      %p95 = scmp.ne.s32.totalorder %s87, %s89
      %p96 = scmp.eq.s32.totalorder %s42, 5
      %p97 = por %p95, %p96
      %p98 = scmp.ne.s32.totalorder %s89, %s90
      %p99 = scmp.eq.s32.totalorder %s42, 0
      %p100 = por %p98, %p99
      %p101 = scmp.ne.s32.totalorder %s89, %s90
      %p102 = scmp.eq.s32.totalorder %s43, 5
      %p103 = por %p101, %p102
      %p105 = scmp.ne.s32.totalorder %s90, %s104
      %p106 = scmp.eq.s32.totalorder %s43, 0
      %p107 = por %p105, %p106
      %s109 = sadd.s32 %s108, 1
      %p112 = scmp.eq.s32.totalorder %s37, 5
      %p113 = scmp.ne.s32.totalorder %s108, %s110
      %p114 = scmp.eq.s32.totalorder %s37, 0
      %p115 = por %p113, %p114
      %p116 = scmp.ne.s32.totalorder %s108, %s110
      %p117 = scmp.eq.s32.totalorder %s42, 5
      %p118 = por %p116, %p117
      %p119 = scmp.ne.s32.totalorder %s110, %s111
      %p120 = scmp.eq.s32.totalorder %s42, 0
      %p121 = por %p119, %p120
      %p122 = scmp.ne.s32.totalorder %s110, %s111
      %p123 = scmp.eq.s32.totalorder %s43, 5
      %p124 = por %p122, %p123
      %p126 = scmp.ne.s32.totalorder %s111, %s125
      %p127 = scmp.eq.s32.totalorder %s43, 0
      %p128 = por %p126, %p127
      %s130 = sadd.s32 %s129, 1
      %p133 = scmp.eq.s32.totalorder %s37, 5
      %p134 = scmp.ne.s32.totalorder %s129, %s131
      %p135 = scmp.eq.s32.totalorder %s37, 0
      %p136 = por %p134, %p135
      %p137 = scmp.ne.s32.totalorder %s129, %s131
      %p138 = scmp.eq.s32.totalorder %s42, 5
      %p139 = por %p137, %p138
      %p140 = scmp.ne.s32.totalorder %s131, %s132
      %p141 = scmp.eq.s32.totalorder %s42, 0
      %p142 = por %p140, %p141
      %p143 = scmp.ne.s32.totalorder %s131, %s132
      %p144 = scmp.eq.s32.totalorder %s43, 5
      %p145 = por %p143, %p144
      %p147 = scmp.ne.s32.totalorder %s132, %s146
      %p148 = scmp.eq.s32.totalorder %s43, 0
      %p149 = por %p147, %p148
      %s151 = sadd.s32 %s150, 1
      %p154 = scmp.eq.s32.totalorder %s37, 5
      %p155 = scmp.ne.s32.totalorder %s150, %s152
      %p156 = scmp.eq.s32.totalorder %s37, 0
      %p157 = por %p155, %p156
      %p158 = scmp.ne.s32.totalorder %s150, %s152
      %p159 = scmp.eq.s32.totalorder %s42, 5
      %p160 = por %p158, %p159
      %p161 = scmp.ne.s32.totalorder %s152, %s153
      %p162 = scmp.eq.s32.totalorder %s42, 0
      %p163 = por %p161, %p162
      %p164 = scmp.ne.s32.totalorder %s152, %s153
      %p165 = scmp.eq.s32.totalorder %s43, 5
      %p166 = por %p164, %p165
      %p168 = scmp.ne.s32.totalorder %s153, %s167
      %p169 = scmp.eq.s32.totalorder %s43, 0
      %p170 = por %p168, %p169
      %s172 = sadd.s32 %s171, 1
      %p175 = scmp.eq.s32.totalorder %s37, 5
      %p176 = scmp.ne.s32.totalorder %s171, %s173
      %p177 = scmp.eq.s32.totalorder %s37, 0
      %p178 = por %p176, %p177
      %p179 = scmp.ne.s32.totalorder %s171, %s173
      %p180 = scmp.eq.s32.totalorder %s42, 5
      %p181 = por %p179, %p180
      %p182 = scmp.ne.s32.totalorder %s173, %s174
      %p183 = scmp.eq.s32.totalorder %s42, 0
      %p184 = por %p182, %p183
      %p185 = scmp.ne.s32.totalorder %s173, %s174
      %p186 = scmp.eq.s32.totalorder %s43, 5
      %p187 = por %p185, %p186
      %p189 = scmp.ne.s32.totalorder %s174, %s188
      %p190 = scmp.eq.s32.totalorder %s43, 0
      %p191 = por %p189, %p190
      %s193 = sadd.s32 %s192, 1
      %p196 = scmp.eq.s32.totalorder %s37, 5
      %p197 = scmp.ne.s32.totalorder %s192, %s194
      %p198 = scmp.eq.s32.totalorder %s37, 0
      %p199 = por %p197, %p198
      %p200 = scmp.ne.s32.totalorder %s192, %s194
      %p201 = scmp.eq.s32.totalorder %s42, 5
      %p202 = por %p200, %p201
      %p203 = scmp.ne.s32.totalorder %s194, %s195
      %p204 = scmp.eq.s32.totalorder %s42, 0
      %p205 = por %p203, %p204
      %p206 = scmp.ne.s32.totalorder %s194, %s195
      %p207 = scmp.eq.s32.totalorder %s43, 5
      %p208 = por %p206, %p207
      %p210 = scmp.ne.s32.totalorder %s195, %s209
      %p211 = scmp.eq.s32.totalorder %s43, 0
      %p212 = por %p210, %p211
      %s214 = sadd.s32 %s213, 1
      %p217 = scmp.eq.s32.totalorder %s37, 5
      %p218 = scmp.ne.s32.totalorder %s213, %s215
      %p219 = scmp.eq.s32.totalorder %s37, 0
      %p220 = por %p218, %p219
      %p221 = scmp.ne.s32.totalorder %s213, %s215
      %p222 = scmp.eq.s32.totalorder %s42, 5
      %p223 = por %p221, %p222
      %p224 = scmp.ne.s32.totalorder %s215, %s216
      %p225 = scmp.eq.s32.totalorder %s42, 0
      %p226 = por %p224, %p225
      %p227 = scmp.ne.s32.totalorder %s215, %s216
      %p228 = scmp.eq.s32.totalorder %s43, 5
      %p229 = por %p227, %p228
      %p231 = scmp.ne.s32.totalorder %s216, %s230
      %p232 = scmp.eq.s32.totalorder %s43, 0
      %p233 = por %p231, %p232
      %s235 = sadd.s32 %s234, 1
      %p238 = scmp.eq.s32.totalorder %s37, 5
      %p239 = scmp.ne.s32.totalorder %s234, %s236
      %p240 = scmp.eq.s32.totalorder %s37, 0
      %p241 = por %p239, %p240
      %p242 = scmp.ne.s32.totalorder %s234, %s236
      %p243 = scmp.eq.s32.totalorder %s42, 5
      %p244 = por %p242, %p243
      %p245 = scmp.ne.s32.totalorder %s236, %s237
      %p246 = scmp.eq.s32.totalorder %s42, 0
      %p247 = por %p245, %p246
      %p248 = scmp.ne.s32.totalorder %s236, %s237
      %p249 = scmp.eq.s32.totalorder %s43, 5
      %p250 = por %p248, %p249
      %p252 = scmp.ne.s32.totalorder %s237, %s251
      %p253 = scmp.eq.s32.totalorder %s43, 0
      %p254 = por %p252, %p253
      %s256 = sadd.s32 %s255, 1
      %p259 = scmp.eq.s32.totalorder %s37, 5
      %p260 = scmp.ne.s32.totalorder %s255, %s257
      %p261 = scmp.eq.s32.totalorder %s37, 0
      %p262 = por %p260, %p261
      %p263 = scmp.ne.s32.totalorder %s255, %s257
      %p264 = scmp.eq.s32.totalorder %s42, 5
      %p265 = por %p263, %p264
      %p266 = scmp.ne.s32.totalorder %s257, %s258
      %p267 = scmp.eq.s32.totalorder %s42, 0
      %p268 = por %p266, %p267
      %p269 = scmp.ne.s32.totalorder %s257, %s258
      %p270 = scmp.eq.s32.totalorder %s43, 5
      %p271 = por %p269, %p270
      %p273 = scmp.ne.s32.totalorder %s258, %s272
      %p274 = scmp.eq.s32.totalorder %s43, 0
      %p275 = por %p273, %p274
      %s277 = sadd.s32 %s276, 1
      %p280 = scmp.eq.s32.totalorder %s37, 5
      %p281 = scmp.ne.s32.totalorder %s276, %s278
      %p282 = scmp.eq.s32.totalorder %s37, 0
      %p283 = por %p281, %p282
      %p284 = scmp.ne.s32.totalorder %s276, %s278
      %p285 = scmp.eq.s32.totalorder %s42, 5
      %p286 = por %p284, %p285
      %p287 = scmp.ne.s32.totalorder %s278, %s279
      %p288 = scmp.eq.s32.totalorder %s42, 0
      %p289 = por %p287, %p288
      %p290 = scmp.ne.s32.totalorder %s278, %s279
      %p291 = scmp.eq.s32.totalorder %s43, 5
      %p292 = por %p290, %p291
      %p294 = scmp.ne.s32.totalorder %s279, %s293
      %p295 = scmp.eq.s32.totalorder %s43, 0
      %p296 = por %p294, %p295
      %s298 = sadd.s32 %s297, 1
      %p301 = scmp.eq.s32.totalorder %s37, 5
      %p302 = scmp.ne.s32.totalorder %s297, %s299
      %p303 = scmp.eq.s32.totalorder %s37, 0
      %p304 = por %p302, %p303
      %p305 = scmp.ne.s32.totalorder %s297, %s299
      %p306 = scmp.eq.s32.totalorder %s42, 5
      %p307 = por %p305, %p306
      %p308 = scmp.ne.s32.totalorder %s299, %s300
      %p309 = scmp.eq.s32.totalorder %s42, 0
      %p310 = por %p308, %p309
      %p311 = scmp.ne.s32.totalorder %s299, %s300
      %p312 = scmp.eq.s32.totalorder %s43, 5
      %p313 = por %p311, %p312
      %p315 = scmp.ne.s32.totalorder %s300, %s314
      %p316 = scmp.eq.s32.totalorder %s43, 0
      %p317 = por %p315, %p316
      %s318 = ssub.s32 %s37, %s44
      %p319 = scmp.eq.s32.totalorder %s318, 0
      %s321 = sadd.s32 %s320, 1
      %s322 = scalar_select %p319, %s320, %s321
      %p325 = pneg %p319
      %p326 = scmp.eq.s32.totalorder %s37, 5
      %p327 = por %p325, %p326
      %p328 = scmp.ne.s32.totalorder %s320, %s323
      %p329 = scmp.eq.s32.totalorder %s37, 0
      %p330 = por %p328, %p329
      %p331 = scmp.ne.s32.totalorder %s320, %s323
      %p332 = scmp.eq.s32.totalorder %s42, 5
      %p333 = por %p331, %p332
      %p334 = scmp.ne.s32.totalorder %s323, %s324
      %p335 = scmp.eq.s32.totalorder %s42, 0
      %p336 = por %p334, %p335
      %p337 = scmp.ne.s32.totalorder %s323, %s324
      %p338 = scmp.eq.s32.totalorder %s43, 5
      %p339 = por %p337, %p338
      %p341 = scmp.ne.s32.totalorder %s324, %s340
      %p342 = scmp.eq.s32.totalorder %s43, 0
      %p343 = por %p341, %p342
      %s344 = ssub.s32 %s37, %s44
      %p345 = scmp.eq.s32.totalorder %s344, 0
      %s347 = sadd.s32 %s346, 1
      %s348 = scalar_select %p345, %s346, %s347
      %p351 = pneg %p345
      %p352 = scmp.eq.s32.totalorder %s37, 5
      %p353 = por %p351, %p352
      %p354 = scmp.ne.s32.totalorder %s346, %s349
      %p355 = scmp.eq.s32.totalorder %s37, 0
      %p356 = por %p354, %p355
      %p357 = scmp.ne.s32.totalorder %s346, %s349
      %p358 = scmp.eq.s32.totalorder %s42, 5
      %p359 = por %p357, %p358
      %p360 = scmp.ne.s32.totalorder %s349, %s350
      %p361 = scmp.eq.s32.totalorder %s42, 0
      %p362 = por %p360, %p361
      %p363 = scmp.ne.s32.totalorder %s349, %s350
      %p364 = scmp.eq.s32.totalorder %s43, 5
      %p365 = por %p363, %p364
      %p367 = scmp.ne.s32.totalorder %s350, %s366
      %p368 = scmp.eq.s32.totalorder %s43, 0
      %p369 = por %p367, %p368
      %s371 = sadd.s32 %s370, 1
      %p374 = scmp.eq.s32.totalorder %s37, 5
      %p375 = scmp.ne.s32.totalorder %s370, %s372
      %p376 = scmp.eq.s32.totalorder %s37, 0
      %p377 = por %p375, %p376
      %p378 = scmp.ne.s32.totalorder %s370, %s372
      %p379 = scmp.eq.s32.totalorder %s42, 5
      %p380 = por %p378, %p379
      %p381 = scmp.ne.s32.totalorder %s372, %s373
      %p382 = scmp.eq.s32.totalorder %s42, 0
      %p383 = por %p381, %p382
      %p384 = scmp.ne.s32.totalorder %s372, %s373
      %p385 = scmp.eq.s32.totalorder %s43, 5
      %p386 = por %p384, %p385
      %p388 = scmp.ne.s32.totalorder %s373, %s387
      %p389 = scmp.eq.s32.totalorder %s43, 0
      %p390 = por %p388, %p389
      %p391 = scmp.le.s32.totalorder 1, %s37
      %p392 = scmp.lt.s32.totalorder %s37, 7
      %p393 = pnand %p391, %p392
      %p394 = pneg %p393
      // Predicated region
      $region9: #{tpu_custom_call.1} parent=5 // pred_check
        _
      $region10: #{tpu_custom_call.1} parent=5 // pred_check_branch
        %396 = sbr.rel (%p393) target = $region12
      $region11: #{tpu_custom_call.1} parent=5 // pred_region
        %s397 = ssub.s32 %s37, 1
        // Predicated region
        $region13: #{tpu_custom_call.1} parent=11 // pred_check
          %p398 = pneg %p58
        $region14: #{tpu_custom_call.1} parent=11 // pred_check_branch
          %400 = sbr.rel (%p398) target = $region16
        $region15: #{tpu_custom_call.1} parent=11 // pred_region
          _
        $region16: #{tpu_custom_call.1} parent=11 // pred_fallthru
          _
        // Predicated region
        $region17: #{tpu_custom_call.1} parent=11 // pred_check
          %p401 = pneg %p79
        $region18: #{tpu_custom_call.1} parent=11 // pred_check_branch
          %403 = sbr.rel (%p401) target = $region20
        $region19: #{tpu_custom_call.1} parent=11 // pred_region
          _
        $region20: #{tpu_custom_call.1} parent=11 // pred_fallthru
          _
        // Predicated region
        $region21: #{tpu_custom_call.1} parent=11 // pred_check
          %p404 = pneg %p100
        $region22: #{tpu_custom_call.1} parent=11 // pred_check_branch
          %406 = sbr.rel (%p404) target = $region24
        $region23: #{tpu_custom_call.1} parent=11 // pred_region
          _
        $region24: #{tpu_custom_call.1} parent=11 // pred_fallthru
          _
        // Predicated region
        $region25: #{tpu_custom_call.1} parent=11 // pred_check
          %p407 = pneg %p121
        $region26: #{tpu_custom_call.1} parent=11 // pred_check_branch
          %409 = sbr.rel (%p407) target = $region28
        $region27: #{tpu_custom_call.1} parent=11 // pred_region
          _
        $region28: #{tpu_custom_call.1} parent=11 // pred_fallthru
          _
        // Predicated region
        $region29: #{tpu_custom_call.1} parent=11 // pred_check
          %p410 = pneg %p142
        $region30: #{tpu_custom_call.1} parent=11 // pred_check_branch
          %412 = sbr.rel (%p410) target = $region32
        $region31: #{tpu_custom_call.1} parent=11 // pred_region
          _
        $region32: #{tpu_custom_call.1} parent=11 // pred_fallthru
          _
        // Predicated region
        $region33: #{tpu_custom_call.1} parent=11 // pred_check
          %p413 = pneg %p163
        $region34: #{tpu_custom_call.1} parent=11 // pred_check_branch
          %415 = sbr.rel (%p413) target = $region36
        $region35: #{tpu_custom_call.1} parent=11 // pred_region
          _
        $region36: #{tpu_custom_call.1} parent=11 // pred_fallthru
          _
        // Predicated region
        $region37: #{tpu_custom_call.1} parent=11 // pred_check
          %p416 = pneg %p184
        $region38: #{tpu_custom_call.1} parent=11 // pred_check_branch
          %418 = sbr.rel (%p416) target = $region40
        $region39: #{tpu_custom_call.1} parent=11 // pred_region
          _
        $region40: #{tpu_custom_call.1} parent=11 // pred_fallthru
          _
        // Predicated region
        $region41: #{tpu_custom_call.1} parent=11 // pred_check
          %p419 = pneg %p205
        $region42: #{tpu_custom_call.1} parent=11 // pred_check_branch
          %421 = sbr.rel (%p419) target = $region44
        $region43: #{tpu_custom_call.1} parent=11 // pred_region
          _
        $region44: #{tpu_custom_call.1} parent=11 // pred_fallthru
          _
        // Predicated region
        $region45: #{tpu_custom_call.1} parent=11 // pred_check
          %p422 = pneg %p226
        $region46: #{tpu_custom_call.1} parent=11 // pred_check_branch
          %424 = sbr.rel (%p422) target = $region48
        $region47: #{tpu_custom_call.1} parent=11 // pred_region
          _
        $region48: #{tpu_custom_call.1} parent=11 // pred_fallthru
          _
        // Predicated region
        $region49: #{tpu_custom_call.1} parent=11 // pred_check
          %p425 = pneg %p247
        $region50: #{tpu_custom_call.1} parent=11 // pred_check_branch
          %427 = sbr.rel (%p425) target = $region52
        $region51: #{tpu_custom_call.1} parent=11 // pred_region
          _
        $region52: #{tpu_custom_call.1} parent=11 // pred_fallthru
          _
        // Predicated region
        $region53: #{tpu_custom_call.1} parent=11 // pred_check
          %p428 = pneg %p268
        $region54: #{tpu_custom_call.1} parent=11 // pred_check_branch
          %430 = sbr.rel (%p428) target = $region56
        $region55: #{tpu_custom_call.1} parent=11 // pred_region
          _
        $region56: #{tpu_custom_call.1} parent=11 // pred_fallthru
          _
        // Predicated region
        $region57: #{tpu_custom_call.1} parent=11 // pred_check
          %p431 = pneg %p289
        $region58: #{tpu_custom_call.1} parent=11 // pred_check_branch
          %433 = sbr.rel (%p431) target = $region60
        $region59: #{tpu_custom_call.1} parent=11 // pred_region
          _
        $region60: #{tpu_custom_call.1} parent=11 // pred_fallthru
          _
        // Predicated region
        $region61: #{tpu_custom_call.1} parent=11 // pred_check
          %p434 = pneg %p310
        $region62: #{tpu_custom_call.1} parent=11 // pred_check_branch
          %436 = sbr.rel (%p434) target = $region64
        $region63: #{tpu_custom_call.1} parent=11 // pred_region
          _
        $region64: #{tpu_custom_call.1} parent=11 // pred_fallthru
          _
      $region12: #{tpu_custom_call.1} parent=5 // pred_fallthru
        _
      %p437 = scmp.lt.s32.totalorder %s37, 6
      // Predicated region
      $region65: #{tpu_custom_call.1} parent=5 // pred_check
        %p438 = pneg %p437
      $region66: #{tpu_custom_call.1} parent=5 // pred_check_branch
        %440 = sbr.rel (%p438) target = $region68
      $region67: #{tpu_custom_call.1} parent=5 // pred_region
        _
      $region68: #{tpu_custom_call.1} parent=5 // pred_fallthru
        _
      %p441 = scmp.le.s32.totalorder 1, %s37
      %p442 = scmp.lt.s32.totalorder %s37, 7
      %p443 = pnand %p441, %p442
      %p444 = pneg %p443
      // Predicated region
      $region69: #{tpu_custom_call.1} parent=5 // pred_check
        _
      $region70: #{tpu_custom_call.1} parent=5 // pred_check_branch
        %446 = sbr.rel (%p443) target = $region72
      $region71: #{tpu_custom_call.1} parent=5 // pred_region
        %s447 = ssub.s32 %s37, 1
        %p448 = pneg %p58
        %p449 = pneg %p55
        %p450 = pneg %p79
        %p451 = pneg %p76
        %p452 = pneg %p100
        %p453 = pneg %p97
        %p454 = pneg %p121
        %p455 = pneg %p118
        %p456 = pneg %p142
        %p457 = pneg %p139
        %p458 = pneg %p163
        %p459 = pneg %p160
        %p460 = pneg %p184
        %p461 = pneg %p181
        %p462 = pneg %p205
        %p463 = pneg %p202
        %p464 = pneg %p226
        %p465 = pneg %p223
        %p466 = pneg %p247
        %p467 = pneg %p244
        %p468 = pneg %p268
        %p469 = pneg %p265
        %p470 = pneg %p289
        %p471 = pneg %p286
        %p472 = pneg %p310
        %p473 = pneg %p307
        %p474 = pneg %p336
        %p475 = pneg %p333
        %s476 = sand.u32 %s323, 1
        %s477 = scalar_lea.sflag [#allocation6], %s476
        %s478 = sand.u32 %s323, 1
        %s479 = scalar_lea.vmem [#allocation5], %s478
        %p480 = pneg %p362
        %p481 = pneg %p359
        %s482 = sand.u32 %s42, 1
        %s483 = scalar_lea.sflag [#allocation8], %s482
        %s484 = sand.u32 %s349, 1
        %s485 = scalar_lea.vmem [#allocation7], %s484
        %p486 = pneg %p383
        %p487 = pneg %p380
        %p488 = scmp.eq.s32.totalorder %s42, 0
        // Predicated region
        $region73: #{tpu_custom_call.1} parent=71 // pred_check
          %p489 = pneg %p488
        $region74: #{tpu_custom_call.1} parent=71 // pred_check_branch
          %491 = sbr.rel (%p489) target = $region76
        $region75: #{tpu_custom_call.1} parent=71 // pred_region
          %v492 = vld [vmem:[%s2] sm:$0x1]
          %493 = vst [vmem:[#allocation2] sm:$0x1] %v492
        $region76: #{tpu_custom_call.1} parent=71 // pred_fallthru
          _
        %v494 = vld [vmem:[#allocation2] sm:$0x1]
        %s495 = sld [smem:[#allocation4 + %s42]]
        %v496 = vlaneseq
        %v497 = vand.u32 %v496, 127
        %v498 = vstv %s495
        %vm499 = vcmp.eq.s32.totalorder %v497, %v498
        %v500 = vsel %vm499, 1, 0
        %v501 = vcvt.s32.f32 %v500
        %v502 = vld [vmem:[%s1] sm:$0xff]
        %v503 = vld [vmem:[%s1 + $0x8] sm:$0xff]
        %v504 = vld [vmem:[%s1 + $0x10] sm:$0xff]
        %v505 = vld [vmem:[%s1 + $0x18] sm:$0xff]
        %v506 = vld [vmem:[%s1 + $0x20] sm:$0xff]
        %v507 = vld [vmem:[%s1 + $0x28] sm:$0xff]
        %vm508 = vcmask 392192
        %v510 = vsel %vm508, %v501, 0
        %512 = vmatpush.msra.mxu0 0.0
        %513 = vmatpush.msra.mxu0 0.0
        %514 = vmatpush.msra.mxu0 0.0
        %515 = vmatpush.msra.mxu0 0.0
        %516 = vmatpush.msra.mxu0 0.0
        %517 = vmatpush.msra.mxu0 0.0
        %518 = vmatpush.msra.mxu0 0.0
        %519 = vmatpush.msra.mxu0 0.0
        %520 = vmatpush.msra.mxu0 0.0
        %521 = vmatpush.msra.mxu0 0.0
        %522 = vmatpush.msra.mxu0 %v507
        %523 = vmatpush.msra.mxu0 %v506
        %524 = vmatpush.msra.mxu0 %v505
        %525 = vmatpush.msra.mxu0 %v504
        %526 = vmatpush.msra.mxu0 %v503
        %527 = vmatpush.msra.mxu0 %v502
        %528 = vmatmul.f32.gmra.mxu0 %v510
        %v529 = vpop.f32.mrf.mxu0
        %v530 = vadd.f32 0.0, %v529
        %531 = vdwg.mxu0
        %v532 = vld [vmem:[%s6] sm:$0xff]
        %v533 = vld [vmem:[%s6 + $0x8] sm:$0xff]
        %v534 = vld [vmem:[%s6 + $0x10] sm:$0xff]
        %v535 = vld [vmem:[%s6 + $0x18] sm:$0xff]
        %v536 = vld [vmem:[%s6 + $0x20] sm:$0xff]
        %v537 = vld [vmem:[%s6 + $0x28] sm:$0xff]
        %v538 = vld [vmem:[%s6 + $0x30] sm:$0xff]
        %v539 = vld [vmem:[%s6 + $0x38] sm:$0xff]
        %v540 = vld [vmem:[%s6 + $0x40] sm:$0xff]
        %v541 = vld [vmem:[%s6 + $0x48] sm:$0xff]
        %v542 = vld [vmem:[%s6 + $0x50] sm:$0xff]
        %v543 = vld [vmem:[%s6 + $0x58] sm:$0xff]
        %v544 = vld [vmem:[%s6 + $0x60] sm:$0xff]
        %v545 = vld [vmem:[%s6 + $0x68] sm:$0xff]
        %v546 = vld [vmem:[%s6 + $0x70] sm:$0xff]
        %v547 = vld [vmem:[%s6 + $0x78] sm:$0xff]
        %v548 = vld [vmem:[%s6 + $0x80] sm:$0xff]
        %v549 = vld [vmem:[%s6 + $0x88] sm:$0xff]
        %v550 = vld [vmem:[%s6 + $0x90] sm:$0xff]
        %v551 = vld [vmem:[%s6 + $0x98] sm:$0xff]
        %v552 = vld [vmem:[%s6 + $0xa0] sm:$0xff]
        %v553 = vld [vmem:[%s6 + $0xa8] sm:$0xff]
        %v554 = vld [vmem:[%s6 + $0xb0] sm:$0xff]
        %v555 = vld [vmem:[%s6 + $0xb8] sm:$0xff]
        %v556 = vld [vmem:[%s6 + $0xc0] sm:$0xff]
        %v557 = vld [vmem:[%s6 + $0xc8] sm:$0xff]
        %v558 = vld [vmem:[%s6 + $0xd0] sm:$0xff]
        %v559 = vld [vmem:[%s6 + $0xd8] sm:$0xff]
        %v560 = vld [vmem:[%s6 + $0xe0] sm:$0xff]
        %v561 = vld [vmem:[%s6 + $0xe8] sm:$0xff]
        %v562 = vld [vmem:[%s6 + $0xf0] sm:$0xff]
        %v563 = vld [vmem:[%s6 + $0xf8] sm:$0xff]
        %v564 = vld [vmem:[%s6 + $0x100] sm:$0xff]
        %v565 = vld [vmem:[%s6 + $0x108] sm:$0xff]
        %v566 = vld [vmem:[%s6 + $0x110] sm:$0xff]
        %v567 = vld [vmem:[%s6 + $0x118] sm:$0xff]
        %v568 = vld [vmem:[%s6 + $0x120] sm:$0xff]
        %v569 = vld [vmem:[%s6 + $0x128] sm:$0xff]
        %v570 = vld [vmem:[%s6 + $0x130] sm:$0xff]
        %v571 = vld [vmem:[%s6 + $0x138] sm:$0xff]
        %v572 = vld [vmem:[%s6 + $0x140] sm:$0xff]
        %v573 = vld [vmem:[%s6 + $0x148] sm:$0xff]
        %v574 = vld [vmem:[%s6 + $0x150] sm:$0xff]
        %v575 = vld [vmem:[%s6 + $0x158] sm:$0xff]
        %v576 = vld [vmem:[%s6 + $0x160] sm:$0xff]
        %v577 = vld [vmem:[%s6 + $0x168] sm:$0xff]
        %v578 = vld [vmem:[%s6 + $0x170] sm:$0xff]
        %v579 = vld [vmem:[%s6 + $0x178] sm:$0xff]
        %v580 = vld [vmem:[%s6 + $0x180] sm:$0xff]
        %v581 = vld [vmem:[%s6 + $0x188] sm:$0xff]
        %v582 = vld [vmem:[%s6 + $0x190] sm:$0xff]
        %v583 = vld [vmem:[%s6 + $0x198] sm:$0xff]
        %v584 = vld [vmem:[%s6 + $0x1a0] sm:$0xff]
        %v585 = vld [vmem:[%s6 + $0x1a8] sm:$0xff]
        %v586 = vld [vmem:[%s6 + $0x1b0] sm:$0xff]
        %v587 = vld [vmem:[%s6 + $0x1b8] sm:$0xff]
        %v588 = vld [vmem:[%s6 + $0x1c0] sm:$0xff]
        %v589 = vld [vmem:[%s6 + $0x1c8] sm:$0xff]
        %v590 = vld [vmem:[%s6 + $0x1d0] sm:$0xff]
        %v591 = vld [vmem:[%s6 + $0x1d8] sm:$0xff]
        %v592 = vld [vmem:[%s6 + $0x1e0] sm:$0xff]
        %v593 = vld [vmem:[%s6 + $0x1e8] sm:$0xff]
        %v594 = vld [vmem:[%s6 + $0x1f0] sm:$0xff]
        %v595 = vld [vmem:[%s6 + $0x1f8] sm:$0xff]
        %596 = vmatpush.msra.mxu0 %v592
        %597 = vmatpush.msra.mxu0 %v588
        %598 = vmatpush.msra.mxu0 %v584
        %599 = vmatpush.msra.mxu0 %v580
        %600 = vmatpush.msra.mxu0 %v576
        %601 = vmatpush.msra.mxu0 %v572
        %602 = vmatpush.msra.mxu0 %v568
        %603 = vmatpush.msra.mxu0 %v564
        %604 = vmatpush.msra.mxu0 %v560
        %605 = vmatpush.msra.mxu0 %v556
        %606 = vmatpush.msra.mxu0 %v552
        %607 = vmatpush.msra.mxu0 %v548
        %608 = vmatpush.msra.mxu0 %v544
        %609 = vmatpush.msra.mxu0 %v540
        %610 = vmatpush.msra.mxu0 %v536
        %611 = vmatpush.msra.mxu0 %v532
        %612 = vmatmul.f32.gmra.mxu0 %v494
        %v613 = vpop.f32.mrf.mxu0
        %v614 = vadd.f32 0.0, %v613
        %615 = vdwg.mxu0
        %616 = vmatpush.msra.mxu0 %v593
        %617 = vmatpush.msra.mxu0 %v589
        %618 = vmatpush.msra.mxu0 %v585
        %619 = vmatpush.msra.mxu0 %v581
        %620 = vmatpush.msra.mxu0 %v577
        %621 = vmatpush.msra.mxu0 %v573
        %622 = vmatpush.msra.mxu0 %v569
        %623 = vmatpush.msra.mxu0 %v565
        %624 = vmatpush.msra.mxu0 %v561
        %625 = vmatpush.msra.mxu0 %v557
        %626 = vmatpush.msra.mxu0 %v553
        %627 = vmatpush.msra.mxu0 %v549
        %628 = vmatpush.msra.mxu0 %v545
        %629 = vmatpush.msra.mxu0 %v541
        %630 = vmatpush.msra.mxu0 %v537
        %631 = vmatpush.msra.mxu0 %v533
        %632 = vmatmul.f32.gmra.mxu0 %v494
        %v633 = vpop.f32.mrf.mxu0
        %v634 = vadd.f32 0.0, %v633
        %635 = vdwg.mxu0
        %636 = vmatpush.msra.mxu0 %v594
        %637 = vmatpush.msra.mxu0 %v590
        %638 = vmatpush.msra.mxu0 %v586
        %639 = vmatpush.msra.mxu0 %v582
        %640 = vmatpush.msra.mxu0 %v578
        %641 = vmatpush.msra.mxu0 %v574
        %642 = vmatpush.msra.mxu0 %v570
        %643 = vmatpush.msra.mxu0 %v566
        %644 = vmatpush.msra.mxu0 %v562
        %645 = vmatpush.msra.mxu0 %v558
        %646 = vmatpush.msra.mxu0 %v554
        %647 = vmatpush.msra.mxu0 %v550
        %648 = vmatpush.msra.mxu0 %v546
        %649 = vmatpush.msra.mxu0 %v542
        %650 = vmatpush.msra.mxu0 %v538
        %651 = vmatpush.msra.mxu0 %v534
        %652 = vmatmul.f32.gmra.mxu0 %v494
        %v653 = vpop.f32.mrf.mxu0
        %v654 = vadd.f32 0.0, %v653
        %655 = vdwg.mxu0
        %656 = vmatpush.msra.mxu0 %v595
        %657 = vmatpush.msra.mxu0 %v591
        %658 = vmatpush.msra.mxu0 %v587
        %659 = vmatpush.msra.mxu0 %v583
        %660 = vmatpush.msra.mxu0 %v579
        %661 = vmatpush.msra.mxu0 %v575
        %662 = vmatpush.msra.mxu0 %v571
        %663 = vmatpush.msra.mxu0 %v567
        %664 = vmatpush.msra.mxu0 %v563
        %665 = vmatpush.msra.mxu0 %v559
        %666 = vmatpush.msra.mxu0 %v555
        %667 = vmatpush.msra.mxu0 %v551
        %668 = vmatpush.msra.mxu0 %v547
        %669 = vmatpush.msra.mxu0 %v543
        %670 = vmatpush.msra.mxu0 %v539
        %671 = vmatpush.msra.mxu0 %v535
        %672 = vmatmul.f32.gmra.mxu0 %v494
        %v673 = vpop.f32.mrf.mxu0
        %v674 = vadd.f32 0.0, %v673
        %675 = vdwg.mxu0
        %v676 = vld [vmem:[%s11] sm:$0x7]
        %v678 = vperm.slane %v676, 0
        %v679 = vperm.slane %v676, 1
        %v680 = vperm.slane %v676, 2
        %681 = vrot.lane.b32.xlu0 %v678, 16
        %v682 = vpop.permute.xlu0 %681
        %683 = vrot.lane.b32.xlu0 %v679, 16
        %v684 = vpop.permute.xlu0 %683
        %685 = vrot.lane.b32.xlu0 %v680, 16
        %v686 = vpop.permute.xlu0 %685
        %vm687 = vcmask 130048
        %v688 = vsel %vm687, %v682, %v684
        %v689 = vsel %vm687, %v684, %v686
        %v694 = vadd.f32 %v614, %v682
        %v695 = vadd.f32 %v634, %v688
        %v696 = vadd.f32 %v654, %v689
        %v697 = vadd.f32 %v674, %v686
        %v698 = vld [vmem:[%s4] sm:$0xff]
        %v699 = vld [vmem:[%s4 + $0x8] sm:$0xff]
        %v700 = vld [vmem:[%s4 + $0x10] sm:$0xff]
        %v701 = vld [vmem:[%s4 + $0x18] sm:$0xff]
        %vm702 = vcmask 261120
        %v704 = vsel %vm702, %v530, 0
        %706 = vmatpush.msra.mxu0 0.0
        %707 = vmatpush.msra.mxu0 0.0
        %708 = vmatpush.msra.mxu0 0.0
        %709 = vmatpush.msra.mxu0 0.0
        %710 = vmatpush.msra.mxu0 0.0
        %711 = vmatpush.msra.mxu0 0.0
        %712 = vmatpush.msra.mxu0 0.0
        %713 = vmatpush.msra.mxu0 0.0
        %714 = vmatpush.msra.mxu0 0.0
        %715 = vmatpush.msra.mxu0 0.0
        %716 = vmatpush.msra.mxu0 0.0
        %717 = vmatpush.msra.mxu0 0.0
        %718 = vmatpush.msra.mxu0 %v701
        %719 = vmatpush.msra.mxu0 %v700
        %720 = vmatpush.msra.mxu0 %v699
        %721 = vmatpush.msra.mxu0 %v698
        %722 = vmatmul.f32.gmra.mxu0 %v704
        %v723 = vpop.f32.mrf.mxu0
        %v724 = vadd.f32 0.0, %v723
        %725 = vdwg.mxu0
        %v726 = vadd.f32 %v724, %v614
        %v727 = vld [vmem:[%s5] sm:$0x1]
        %v728 = vadd.f32 %v726, %v727
        %vm729 = vcmask 122880
        %v730 = vsel %vm729, %v728, -inf
        %731 = vmax.xlane.f32.xlu0 %v730
        %v732 = vpop.xlane.xlu0 %731
        %v733 = vsub.f32 %v728, %v732
        %v734 = vmul.f32 %v733, 1.442695
        %v735 = vpow.pop %v734
        %v736 = vsel %vm729, %v735, 0.0
        %737 = vadd.xlane.f32.xlu0 %v736
        %v738 = vpop.xlane.xlu0 %737
        %v739 = vrcp.pop %v738
        %v740 = vmul.f32 %v738, %v739
        %v741 = vsub.f32 1.0, %v740
        %v742 = vmul.f32 %v739, %v741
        %v743 = vadd.f32 %v739, %v742
        %vm744 = vweird.f32 %v738
        %vm745 = vweird.f32 %v739
        %vm746 = vmor %vm744, %vm745
        %v747 = vsel %vm746, %v739, %v743
        %v748 = vand.u32 2147483647, %v738
        %vm749 = vcmp.eq.f32.partialorder %v748, 8.507059e+37
        %v750 = vand.u32 %v738, 2147483648
        %v751 = vor.u32 1.1754944e-38, %v750
        %v752 = vsel %vm749, %v751, %v747
        %v753 = vmul.f32 %v735, %v752
        %754 = vst.msk [vmem:[%s485] sm:$0x1] %vm729, %v753
        %v755 = vld [vmem:[%s3] sm:$0xff]
        %v756 = vld [vmem:[%s3 + $0x8] sm:$0xff]
        %v758 = vsel %vm687, %v753, 0
        %760 = vmatpush.msra.mxu0 0.0
        %761 = vmatpush.msra.mxu0 0.0
        %762 = vmatpush.msra.mxu0 0.0
        %763 = vmatpush.msra.mxu0 0.0
        %764 = vmatpush.msra.mxu0 0.0
        %765 = vmatpush.msra.mxu0 0.0
        %766 = vmatpush.msra.mxu0 0.0
        %767 = vmatpush.msra.mxu0 0.0
        %768 = vmatpush.msra.mxu0 0.0
        %769 = vmatpush.msra.mxu0 0.0
        %770 = vmatpush.msra.mxu0 0.0
        %771 = vmatpush.msra.mxu0 0.0
        %772 = vmatpush.msra.mxu0 0.0
        %773 = vmatpush.msra.mxu0 0.0
        %774 = vmatpush.msra.mxu0 %v756
        %775 = vmatpush.msra.mxu0 %v755
        %776 = vmatmul.f32.gmra.mxu0 %v758
        %v777 = vpop.f32.mrf.mxu0
        %v778 = vadd.f32 0.0, %v777
        %779 = vdwg.mxu0
        %v780 = vld [vmem:[%s7] sm:$0xff]
        %v781 = vld [vmem:[%s7 + $0x8] sm:$0xff]
        %v782 = vld [vmem:[%s7 + $0x10] sm:$0xff]
        %v783 = vld [vmem:[%s7 + $0x18] sm:$0xff]
        %v785 = vsel %vm702, %v778, 0
        %787 = vmatpush.msra.mxu0 0.0
        %788 = vmatpush.msra.mxu0 0.0
        %789 = vmatpush.msra.mxu0 0.0
        %790 = vmatpush.msra.mxu0 0.0
        %791 = vmatpush.msra.mxu0 0.0
        %792 = vmatpush.msra.mxu0 0.0
        %793 = vmatpush.msra.mxu0 0.0
        %794 = vmatpush.msra.mxu0 0.0
        %795 = vmatpush.msra.mxu0 0.0
        %796 = vmatpush.msra.mxu0 0.0
        %797 = vmatpush.msra.mxu0 0.0
        %798 = vmatpush.msra.mxu0 0.0
        %799 = vmatpush.msra.mxu0 %v783
        %800 = vmatpush.msra.mxu0 %v782
        %801 = vmatpush.msra.mxu0 %v781
        %802 = vmatpush.msra.mxu0 %v780
        %803 = vmatmul.f32.gmra.mxu0 %v785
        %v804 = vpop.f32.mrf.mxu0
        %v805 = vadd.f32 0.0, %v804
        %806 = vdwg.mxu0
        %808 = vrot.lane.b32.xlu0 %v805, 16
        %v809 = vpop.permute.xlu0 %808
        %v811 = vadd.f32 %v724, %v809
        %v812 = vld [vmem:[%s8] sm:$0x1]
        %v814 = vperm.slane %v812, 0
        %815 = vrot.lane.b32.xlu0 %v814, 16
        %v816 = vpop.permute.xlu0 %815
        %v818 = vadd.f32 %v811, %v816
        %v819 = vmax.f32 %v818, 0.0
        %v820 = vld [vmem:[%s9] sm:$0xff]
        %v821 = vld [vmem:[%s9 + $0x8] sm:$0xff]
        %v822 = vld [vmem:[%s9 + $0x10] sm:$0xff]
        %v823 = vld [vmem:[%s9 + $0x18] sm:$0xff]
        %v824 = vld [vmem:[%s10] sm:$0x1]
        %826 = vrot.lane.b32.xlu0 %v819, 112
        %v827 = vpop.permute.xlu0 %826
        %v828 = vsel %vm702, %v827, 0
        %830 = vmatpush.msra.mxu0 0.0
        %831 = vmatpush.msra.mxu0 0.0
        %832 = vmatpush.msra.mxu0 0.0
        %833 = vmatpush.msra.mxu0 0.0
        %834 = vmatpush.msra.mxu0 0.0
        %835 = vmatpush.msra.mxu0 0.0
        %836 = vmatpush.msra.mxu0 0.0
        %837 = vmatpush.msra.mxu0 0.0
        %838 = vmatpush.msra.mxu0 0.0
        %839 = vmatpush.msra.mxu0 0.0
        %840 = vmatpush.msra.mxu0 0.0
        %841 = vmatpush.msra.mxu0 0.0
        %842 = vmatpush.msra.mxu0 %v823
        %843 = vmatpush.msra.mxu0 %v822
        %844 = vmatpush.msra.mxu0 %v821
        %845 = vmatpush.msra.mxu0 %v820
        %846 = vmatmul.f32.gmra.mxu0 %v828
        %v847 = vpop.f32.mrf.mxu0
        %v848 = vadd.f32 %v824, %v847
        %849 = vdwg.mxu0
        %851 = vrot.lane.b32.xlu0 %v694, 112
        %v852 = vpop.permute.xlu0 %851
        %v854 = vadd.f32 %v848, %v852
        %v855 = vxor.u32 %v854, 2147483648
        %v856 = vmul.f32 %v855, 1.442695
        %v857 = vpow.pop %v856
        %v858 = vadd.f32 %v857, 1.0
        %v859 = vrcp.pop %v858
        %v860 = vmul.f32 %v858, %v859
        %v861 = vsub.f32 1.0, %v860
        %v862 = vmul.f32 %v859, %v861
        %v863 = vadd.f32 %v859, %v862
        %vm864 = vweird.f32 %v858
        %vm865 = vweird.f32 %v859
        %vm866 = vmor %vm864, %vm865
        %v867 = vsel %vm866, %v859, %v863
        %v868 = vand.u32 2147483647, %v858
        %vm869 = vcmp.eq.f32.partialorder %v868, 8.507059e+37
        %v870 = vand.u32 %v858, 2147483648
        %v871 = vor.u32 1.1754944e-38, %v870
        %v872 = vsel %vm869, %v871, %v867
        %v873 = vmul.f32 1.0, %v872
        %874 = vrot.lane.b32.xlu0 %v694, 48
        %v875 = vpop.permute.xlu0 %874
        %v877 = vmul.f32 %v873, %v875
        %879 = vrot.lane.b32.xlu0 %v877, 64
        %v880 = vpop.permute.xlu0 %879
        %v882 = vadd.f32 %v848, %v880
        %v883 = vtanh.pop %v882
        %v884 = vsub.f32 1.0, %v873
        %886 = vrot.lane.b32.xlu0 %v883, 96
        %v887 = vpop.permute.xlu0 %886
        %v889 = vmul.f32 %v884, %v887
        %v891 = vperm.slane %v494, 0
        %892 = vrot.lane.b32.xlu0 %v891, 32
        %v893 = vpop.permute.xlu0 %892
        %v895 = vmul.f32 %v873, %v893
        %v896 = vadd.f32 %v889, %v895
        %s897 = scalar_lea.vmem %s9, 32
        %v898 = vld [vmem:[%s897] sm:$0xff]
        %v899 = vld [vmem:[%s897 + $0x8] sm:$0xff]
        %v900 = vld [vmem:[%s897 + $0x10] sm:$0xff]
        %v901 = vld [vmem:[%s897 + $0x18] sm:$0xff]
        %v902 = vld [vmem:[%s10 + $0x1] sm:$0x1]
        %904 = vrot.lane.b32.xlu0 %v896, 96
        %v905 = vpop.permute.xlu0 %904
        %v906 = vsel %vm702, %v905, 0
        %908 = vmatpush.msra.mxu0 0.0
        %909 = vmatpush.msra.mxu0 0.0
        %910 = vmatpush.msra.mxu0 0.0
        %911 = vmatpush.msra.mxu0 0.0
        %912 = vmatpush.msra.mxu0 0.0
        %913 = vmatpush.msra.mxu0 0.0
        %914 = vmatpush.msra.mxu0 0.0
        %915 = vmatpush.msra.mxu0 0.0
        %916 = vmatpush.msra.mxu0 0.0
        %917 = vmatpush.msra.mxu0 0.0
        %918 = vmatpush.msra.mxu0 0.0
        %919 = vmatpush.msra.mxu0 0.0
        %920 = vmatpush.msra.mxu0 %v901
        %921 = vmatpush.msra.mxu0 %v900
        %922 = vmatpush.msra.mxu0 %v899
        %923 = vmatpush.msra.mxu0 %v898
        %924 = vmatmul.f32.gmra.mxu0 %v906
        %v925 = vpop.f32.mrf.mxu0
        %v926 = vadd.f32 %v902, %v925
        %927 = vdwg.mxu0
        %929 = vrot.lane.b32.xlu0 %v694, 16
        %v930 = vpop.permute.xlu0 %929
        %931 = vrot.lane.b32.xlu0 %v695, 16
        %v932 = vpop.permute.xlu0 %931
        %v933 = vsel %vm687, %v930, %v932
        %v935 = vadd.f32 %v926, %v933
        %v936 = vxor.u32 %v935, 2147483648
        %v937 = vmul.f32 %v936, 1.442695
        %v938 = vpow.pop %v937
        %v939 = vadd.f32 %v938, 1.0
        %v940 = vrcp.pop %v939
        %v941 = vmul.f32 %v939, %v940
        %v942 = vsub.f32 1.0, %v941
        %v943 = vmul.f32 %v940, %v942
        %v944 = vadd.f32 %v940, %v943
        %vm945 = vweird.f32 %v939
        %vm946 = vweird.f32 %v940
        %vm947 = vmor %vm945, %vm946
        %v948 = vsel %vm947, %v940, %v944
        %v949 = vand.u32 2147483647, %v939
        %vm950 = vcmp.eq.f32.partialorder %v949, 8.507059e+37
        %v951 = vand.u32 %v939, 2147483648
        %v952 = vor.u32 1.1754944e-38, %v951
        %v953 = vsel %vm950, %v952, %v948
        %v954 = vmul.f32 1.0, %v953
        %v956 = vadd.f32 %v926, %v932
        %v957 = vxor.u32 %v956, 2147483648
        %v958 = vmul.f32 %v957, 1.442695
        %v959 = vpow.pop %v958
        %v960 = vadd.f32 %v959, 1.0
        %v961 = vrcp.pop %v960
        %v962 = vmul.f32 %v960, %v961
        %v963 = vsub.f32 1.0, %v962
        %v964 = vmul.f32 %v961, %v963
        %v965 = vadd.f32 %v961, %v964
        %vm966 = vweird.f32 %v960
        %vm967 = vweird.f32 %v961
        %vm968 = vmor %vm966, %vm967
        %v969 = vsel %vm968, %v961, %v965
        %v970 = vand.u32 2147483647, %v960
        %vm971 = vcmp.eq.f32.partialorder %v970, 8.507059e+37
        %v972 = vand.u32 %v960, 2147483648
        %v973 = vor.u32 1.1754944e-38, %v972
        %v974 = vsel %vm971, %v973, %v969
        %v975 = vmul.f32 1.0, %v974
        %976 = vrot.lane.b32.xlu0 %v695, 80
        %v977 = vpop.permute.xlu0 %976
        %v979 = vmul.f32 %v954, %v977
        %981 = vrot.lane.b32.xlu0 %v979, 64
        %v982 = vpop.permute.xlu0 %981
        %v984 = vadd.f32 %v926, %v982
        %v985 = vtanh.pop %v984
        %v986 = vsub.f32 1.0, %v975
        %988 = vrot.lane.b32.xlu0 %v985, 96
        %v989 = vpop.permute.xlu0 %988
        %v991 = vmul.f32 %v986, %v989
        %v992 = vmul.f32 %v975, %v494
        %v993 = vadd.f32 %v991, %v992
        %s994 = scalar_lea.vmem %s9, 64
        %v995 = vld [vmem:[%s994] sm:$0xff]
        %v996 = vld [vmem:[%s994 + $0x8] sm:$0xff]
        %v997 = vld [vmem:[%s994 + $0x10] sm:$0xff]
        %v998 = vld [vmem:[%s994 + $0x18] sm:$0xff]
        %v999 = vld [vmem:[%s10 + $0x2] sm:$0x1]
        %1001 = vrot.lane.b32.xlu0 %v993, 96
        %v1002 = vpop.permute.xlu0 %1001
        %v1003 = vsel %vm702, %v1002, 0
        %1005 = vmatpush.msra.mxu0 0.0
        %1006 = vmatpush.msra.mxu0 0.0
        %1007 = vmatpush.msra.mxu0 0.0
        %1008 = vmatpush.msra.mxu0 0.0
        %1009 = vmatpush.msra.mxu0 0.0
        %1010 = vmatpush.msra.mxu0 0.0
        %1011 = vmatpush.msra.mxu0 0.0
        %1012 = vmatpush.msra.mxu0 0.0
        %1013 = vmatpush.msra.mxu0 0.0
        %1014 = vmatpush.msra.mxu0 0.0
        %1015 = vmatpush.msra.mxu0 0.0
        %1016 = vmatpush.msra.mxu0 0.0
        %1017 = vmatpush.msra.mxu0 %v998
        %1018 = vmatpush.msra.mxu0 %v997
        %1019 = vmatpush.msra.mxu0 %v996
        %1020 = vmatpush.msra.mxu0 %v995
        %1021 = vmatmul.f32.gmra.mxu0 %v1003
        %v1022 = vpop.f32.mrf.mxu0
        %v1023 = vadd.f32 %v999, %v1022
        %1024 = vdwg.mxu0
        %1025 = vrot.lane.b32.xlu0 %v695, 48
        %v1026 = vpop.permute.xlu0 %1025
        %v1028 = vadd.f32 %v1023, %v1026
        %v1029 = vxor.u32 %v1028, 2147483648
        %v1030 = vmul.f32 %v1029, 1.442695
        %v1031 = vpow.pop %v1030
        %v1032 = vadd.f32 %v1031, 1.0
        %v1033 = vrcp.pop %v1032
        %v1034 = vmul.f32 %v1032, %v1033
        %v1035 = vsub.f32 1.0, %v1034
        %v1036 = vmul.f32 %v1033, %v1035
        %v1037 = vadd.f32 %v1033, %v1036
        %vm1038 = vweird.f32 %v1032
        %vm1039 = vweird.f32 %v1033
        %vm1040 = vmor %vm1038, %vm1039
        %v1041 = vsel %vm1040, %v1033, %v1037
        %v1042 = vand.u32 2147483647, %v1032
        %vm1043 = vcmp.eq.f32.partialorder %v1042, 8.507059e+37
        %v1044 = vand.u32 %v1032, 2147483648
        %v1045 = vor.u32 1.1754944e-38, %v1044
        %v1046 = vsel %vm1043, %v1045, %v1041
        %v1047 = vmul.f32 1.0, %v1046
        %1049 = vrot.lane.b32.xlu0 %v696, 48
        %v1050 = vpop.permute.xlu0 %1049
        %v1051 = vsel %vm508, %v1026, %v1050
        %v1053 = vadd.f32 %v1023, %v1051
        %v1054 = vxor.u32 %v1053, 2147483648
        %v1055 = vmul.f32 %v1054, 1.442695
        %v1056 = vpow.pop %v1055
        %v1057 = vadd.f32 %v1056, 1.0
        %v1058 = vrcp.pop %v1057
        %v1059 = vmul.f32 %v1057, %v1058
        %v1060 = vsub.f32 1.0, %v1059
        %v1061 = vmul.f32 %v1058, %v1060
        %v1062 = vadd.f32 %v1058, %v1061
        %vm1063 = vweird.f32 %v1057
        %vm1064 = vweird.f32 %v1058
        %vm1065 = vmor %vm1063, %vm1064
        %v1066 = vsel %vm1065, %v1058, %v1062
        %v1067 = vand.u32 2147483647, %v1057
        %vm1068 = vcmp.eq.f32.partialorder %v1067, 8.507059e+37
        %v1069 = vand.u32 %v1057, 2147483648
        %v1070 = vor.u32 1.1754944e-38, %v1069
        %v1071 = vsel %vm1068, %v1070, %v1066
        %v1072 = vmul.f32 1.0, %v1071
        %1073 = vrot.lane.b32.xlu0 %v696, 112
        %v1074 = vpop.permute.xlu0 %1073
        %v1076 = vmul.f32 %v1047, %v1074
        %1078 = vrot.lane.b32.xlu0 %v1076, 64
        %v1079 = vpop.permute.xlu0 %1078
        %v1081 = vadd.f32 %v1023, %v1079
        %v1082 = vtanh.pop %v1081
        %v1083 = vsub.f32 1.0, %v1072
        %1085 = vrot.lane.b32.xlu0 %v1082, 96
        %v1086 = vpop.permute.xlu0 %1085
        %v1088 = vmul.f32 %v1083, %v1086
        %1089 = vrot.lane.b32.xlu0 %v891, 96
        %v1090 = vpop.permute.xlu0 %1089
        %v1092 = vmul.f32 %v1072, %v1090
        %v1093 = vadd.f32 %v1088, %v1092
        %s1094 = scalar_lea.vmem %s9, 96
        %v1095 = vld [vmem:[%s1094] sm:$0xff]
        %v1096 = vld [vmem:[%s1094 + $0x8] sm:$0xff]
        %v1097 = vld [vmem:[%s1094 + $0x10] sm:$0xff]
        %v1098 = vld [vmem:[%s1094 + $0x18] sm:$0xff]
        %v1099 = vld [vmem:[%s10 + $0x3] sm:$0x1]
        %1101 = vrot.lane.b32.xlu0 %v1093, 96
        %v1102 = vpop.permute.xlu0 %1101
        %v1103 = vsel %vm702, %v1102, 0
        %1105 = vmatpush.msra.mxu0 0.0
        %1106 = vmatpush.msra.mxu0 0.0
        %1107 = vmatpush.msra.mxu0 0.0
        %1108 = vmatpush.msra.mxu0 0.0
        %1109 = vmatpush.msra.mxu0 0.0
        %1110 = vmatpush.msra.mxu0 0.0
        %1111 = vmatpush.msra.mxu0 0.0
        %1112 = vmatpush.msra.mxu0 0.0
        %1113 = vmatpush.msra.mxu0 0.0
        %1114 = vmatpush.msra.mxu0 0.0
        %1115 = vmatpush.msra.mxu0 0.0
        %1116 = vmatpush.msra.mxu0 0.0
        %1117 = vmatpush.msra.mxu0 %v1098
        %1118 = vmatpush.msra.mxu0 %v1097
        %1119 = vmatpush.msra.mxu0 %v1096
        %1120 = vmatpush.msra.mxu0 %v1095
        %1121 = vmatmul.f32.gmra.mxu0 %v1103
        %v1122 = vpop.f32.mrf.mxu0
        %v1123 = vadd.f32 %v1099, %v1122
        %1124 = vdwg.mxu0
        %1125 = vrot.lane.b32.xlu0 %v696, 80
        %v1126 = vpop.permute.xlu0 %1125
        %v1128 = vadd.f32 %v1123, %v1126
        %v1129 = vxor.u32 %v1128, 2147483648
        %v1130 = vmul.f32 %v1129, 1.442695
        %v1131 = vpow.pop %v1130
        %v1132 = vadd.f32 %v1131, 1.0
        %v1133 = vrcp.pop %v1132
        %v1134 = vmul.f32 %v1132, %v1133
        %v1135 = vsub.f32 1.0, %v1134
        %v1136 = vmul.f32 %v1133, %v1135
        %v1137 = vadd.f32 %v1133, %v1136
        %vm1138 = vweird.f32 %v1132
        %vm1139 = vweird.f32 %v1133
        %vm1140 = vmor %vm1138, %vm1139
        %v1141 = vsel %vm1140, %v1133, %v1137
        %v1142 = vand.u32 2147483647, %v1132
        %vm1143 = vcmp.eq.f32.partialorder %v1142, 8.507059e+37
        %v1144 = vand.u32 %v1132, 2147483648
        %v1145 = vor.u32 1.1754944e-38, %v1144
        %v1146 = vsel %vm1143, %v1145, %v1141
        %v1147 = vmul.f32 1.0, %v1146
        %1149 = vrot.lane.b32.xlu0 %v696, 16
        %v1150 = vpop.permute.xlu0 %1149
        %1151 = vrot.lane.b32.xlu0 %v697, 16
        %v1152 = vpop.permute.xlu0 %1151
        %v1153 = vsel %vm687, %v1150, %v1152
        %v1155 = vmul.f32 %v1147, %v1153
        %1157 = vrot.lane.b32.xlu0 %v1155, 64
        %v1158 = vpop.permute.xlu0 %1157
        %v1160 = vadd.f32 %v1123, %v1158
        %v1161 = vtanh.pop %v1160
        %v1162 = vsub.f32 1.0, %v1147
        %1164 = vrot.lane.b32.xlu0 %v1161, 96
        %v1165 = vpop.permute.xlu0 %1164
        %v1167 = vmul.f32 %v1162, %v1165
        %1168 = vrot.lane.b32.xlu0 %v891, 64
        %v1169 = vpop.permute.xlu0 %1168
        %v1171 = vmul.f32 %v1147, %v1169
        %v1172 = vadd.f32 %v1167, %v1171
        %1174 = vrot.lane.b32.xlu0 %v1093, 32
        %v1175 = vpop.permute.xlu0 %1174
        %1178 = vrot.lane.b32.xlu0 %v1172, 64
        %v1179 = vpop.permute.xlu0 %1178
        %v1181 = vsel %vm702, %v905, %v993
        %vm1182 = vcmask 523264
        %v1183 = vsel %vm1182, %v1181, %v1175
        %vm1184 = vcmask 785408
        %v1185 = vsel %vm1184, %v1183, %v1179
        %1186 = vst [vmem:[#allocation2] sm:$0x1] %v1185
        %v1187 = vld [vmem:[%s12] sm:$0xff]
        %v1188 = vld [vmem:[%s12 + $0x8] sm:$0xff]
        %v1189 = vld [vmem:[%s12 + $0x10] sm:$0xff]
        %v1190 = vld [vmem:[%s12 + $0x18] sm:$0xff]
        %v1191 = vld [vmem:[%s13] sm:$0x1]
        %1192 = vrot.lane.b32.xlu0 %v1172, 96
        %v1193 = vpop.permute.xlu0 %1192
        %v1194 = vsel %vm702, %v1193, 0
        %1196 = vmatpush.msra.mxu0 0.0
        %1197 = vmatpush.msra.mxu0 0.0
        %1198 = vmatpush.msra.mxu0 0.0
        %1199 = vmatpush.msra.mxu0 0.0
        %1200 = vmatpush.msra.mxu0 0.0
        %1201 = vmatpush.msra.mxu0 0.0
        %1202 = vmatpush.msra.mxu0 0.0
        %1203 = vmatpush.msra.mxu0 0.0
        %1204 = vmatpush.msra.mxu0 0.0
        %1205 = vmatpush.msra.mxu0 0.0
        %1206 = vmatpush.msra.mxu0 0.0
        %1207 = vmatpush.msra.mxu0 0.0
        %1208 = vmatpush.msra.mxu0 %v1190
        %1209 = vmatpush.msra.mxu0 %v1189
        %1210 = vmatpush.msra.mxu0 %v1188
        %1211 = vmatpush.msra.mxu0 %v1187
        %1212 = vmatmul.f32.gmra.mxu0 %v1194
        %v1213 = vpop.f32.mrf.mxu0
        %v1214 = vadd.f32 %v1191, %v1213
        %1215 = vdwg.mxu0
        %vm1216 = vcmask 385024
        %v1217 = vsel %vm1216, %v1214, -inf
        %1218 = vmax.xlane.f32.xlu0 %v1217
        %v1219 = vpop.xlane.xlu0 %1218
        %v1220 = vsub.f32 %v1214, %v1219
        %v1221 = vmul.f32 %v1220, 1.442695
        %v1222 = vpow.pop %v1221
        %v1223 = vsel %vm1216, %v1222, 0.0
        %1224 = vadd.xlane.f32.xlu0 %v1223
        %v1225 = vpop.xlane.xlu0 %1224
        %v1226 = vlog2.pop %v1225
        %v1227 = vmul.f32 %v1226, 0.6931472
        %v1228 = vadd.f32 %v1227, %v1219
        %v1229 = vsub.f32 %v1214, %v1228
        %1230 = vst.msk [vmem:[%s479] sm:$0x1] %vm1216, %v1229
        %p1231 = scmp.eq.s32.totalorder %s42, 5
        // Predicated region
        $region77: #{tpu_custom_call.1} parent=71 // pred_check
          %p1232 = pneg %p1231
        $region78: #{tpu_custom_call.1} parent=71 // pred_check_branch
          %1234 = sbr.rel (%p1232) target = $region80
        $region79: #{tpu_custom_call.1} parent=71 // pred_region
          %v1235 = vld [vmem:[#allocation2] sm:$0x1]
          %1236 = vst [vmem:[#allocation9] sm:$0x1] %v1235
        $region80: #{tpu_custom_call.1} parent=71 // pred_fallthru
          _
        %s1237 = sand.u32 %s323, 1
        %s1238 = scalar_lea.sflag [#allocation6], %s1237
        %s1239 = sand.u32 %s323, 1
        %s1240 = scalar_lea.vmem [#allocation5], %s1239
        %s1241 = sand.u32 %s42, 1
        %s1242 = scalar_lea.sflag [#allocation8], %s1241
        %s1243 = sand.u32 %s349, 1
        %s1244 = scalar_lea.vmem [#allocation7], %s1243
        // Predicated region
        $region81: #{tpu_custom_call.1} parent=71 // pred_check
          %p1245 = pneg %p333
        $region82: #{tpu_custom_call.1} parent=71 // pred_check_branch
          %1247 = sbr.rel (%p1245) target = $region84
        $region83: #{tpu_custom_call.1} parent=71 // pred_region
          %1249 = vsyncadd %s1238, 0
          %s1250 = scalar_lea.hbm %s14, %s42
          %s1252 = sshll.u32 %s1240, 4
          %s1253 = int_to_ptr.vmem [resolvable:$true] %s1252
          %s1254 = sshll.u32 %s1250, 4
          %s1255 = int_to_ptr.hbm [resolvable:$true] %s1254
          %1257 = dma.vmem_to_hbm [thread:$0]  %s1253, 16, %s1255, %s1238
        $region84: #{tpu_custom_call.1} parent=71 // pred_fallthru
          _
        // Predicated region
        $region85: #{tpu_custom_call.1} parent=71 // pred_check
          %p1258 = pneg %p359
        $region86: #{tpu_custom_call.1} parent=71 // pred_check_branch
          %1260 = sbr.rel (%p1258) target = $region88
        $region87: #{tpu_custom_call.1} parent=71 // pred_region
          %1262 = vsyncadd %s1242, 0
          %s1263 = scalar_lea.hbm %s15, %s42
          %s1265 = sshll.u32 %s1244, 4
          %s1266 = int_to_ptr.vmem [resolvable:$true] %s1265
          %s1267 = sshll.u32 %s1263, 4
          %s1268 = int_to_ptr.hbm [resolvable:$true] %s1267
          %1270 = dma.vmem_to_hbm [thread:$0]  %s1266, 16, %s1268, %s1242
        $region88: #{tpu_custom_call.1} parent=71 // pred_fallthru
          _
        // Predicated region
        $region89: #{tpu_custom_call.1} parent=71 // pred_check
          %p1271 = pneg %p380
        $region90: #{tpu_custom_call.1} parent=71 // pred_check_branch
          %1273 = sbr.rel (%p1271) target = $region92
        $region91: #{tpu_custom_call.1} parent=71 // pred_region
          %1275 = vsyncadd [#allocation8], 0
          %s1277 = sshll.u32 [#allocation9], 4
          %s1278 = int_to_ptr.vmem [resolvable:$true] %s1277
          %s1279 = sshll.u32 %s16, 4
          %s1280 = int_to_ptr.hbm [resolvable:$true] %s1279
          %1282 = dma.vmem_to_hbm [thread:$0]  %s1278, 16, %s1280, [#allocation8]
        $region92: #{tpu_custom_call.1} parent=71 // pred_fallthru
          _
        // Predicated region
        $region93: #{tpu_custom_call.1} parent=71 // pred_check
          %p1283 = pneg %p380
        $region94: #{tpu_custom_call.1} parent=71 // pred_check_branch
          %1285 = sbr.rel (%p1283) target = $region96
        $region95: #{tpu_custom_call.1} parent=71 // pred_region
          %1287 = dma.done [#allocation8], 16
        $region96: #{tpu_custom_call.1} parent=71 // pred_fallthru
          _
      $region72: #{tpu_custom_call.1} parent=5 // pred_fallthru
        _
      %p1288 = scmp.le.s32.totalorder 2, %s37
      // Predicated region
      $region97: #{tpu_custom_call.1} parent=5 // pred_check
        %p1289 = pneg %p1288
      $region98: #{tpu_custom_call.1} parent=5 // pred_check_branch
        %1291 = sbr.rel (%p1289) target = $region100
      $region99: #{tpu_custom_call.1} parent=5 // pred_region
        %s1292 = ssub.s32 %s37, 2
        // Predicated region
        $region101: #{tpu_custom_call.1} parent=99 // pred_check
          %p1293 = pneg %p339
        $region102: #{tpu_custom_call.1} parent=99 // pred_check_branch
          %1295 = sbr.rel (%p1293) target = $region104
        $region103: #{tpu_custom_call.1} parent=99 // pred_region
          %s1296 = sand.u32 %s324, 1
          %s1297 = scalar_lea.sflag [#allocation6], %s1296
          %s1298 = sand.u32 %s324, 1
          %s1299 = scalar_lea.vmem [#allocation5], %s1298
          %1301 = dma.done %s1297, 16
        $region104: #{tpu_custom_call.1} parent=99 // pred_fallthru
          _
        // Predicated region
        $region105: #{tpu_custom_call.1} parent=99 // pred_check
          %p1302 = pneg %p365
        $region106: #{tpu_custom_call.1} parent=99 // pred_check_branch
          %1304 = sbr.rel (%p1302) target = $region108
        $region107: #{tpu_custom_call.1} parent=99 // pred_region
          %s1305 = sand.u32 %s43, 1
          %s1306 = scalar_lea.sflag [#allocation8], %s1305
          %s1307 = sand.u32 %s350, 1
          %s1308 = scalar_lea.vmem [#allocation7], %s1307
          %1310 = dma.done %s1306, 16
        $region108: #{tpu_custom_call.1} parent=99 // pred_fallthru
          _
      $region100: #{tpu_custom_call.1} parent=5 // pred_fallthru
        _
    $region6: #{tpu_custom_call.1} parent=1 // loop_footer
      %s41 = sadd.s32 1, %s37
    $region7: #{tpu_custom_call.1} parent=1 // loop_footer_branch
      %36 = sbr.rel target = $region3
    $region8: #{tpu_custom_call.1} parent=1 // loop_exit
      _
    %1311 = vsyncpa [#allocation6], 1
    %s1312 = scalar_lea.sflag [#allocation6], 1
    %1313 = vsyncpa %s1312, 1
    %1314 = vsyncpa [#allocation8], 1
    %s1315 = scalar_lea.sflag [#allocation8], 1
    %1316 = vsyncpa %s1315, 1

</llo_original>
